<compile_context>
chip_gen: v5e
topology: v5e:2x2
jax: 0.10.0
libtpu: 0.0.40
codegen_flags: <defaults>
</compile_context>

<pallas_src>
import functools

import jax
import jax.numpy as jnp
from jax.experimental import pallas as pl
from jax.experimental.pallas import tpu as pltpu

LANE = 128


def _round_up(x, m):
    return (x + m - 1) // m * m


# ----------------------------------------------------------------------------
# Kernel 1: conv (stride 1, pre-padded input) + per-block BN partial statistics.
#   xpad_ref  : (1, Hp, Wp, Cp)        padded image of one batch element (VMEM)
#   w_ref     : (KH*KW, Cp, Cop)       channel-padded weights (VMEM)
#   y_ref     : (1, TH*Wo, Cop)        conv output tile, lane-dense (Cop = k*128)
#   stats_ref : (1, 1, 2, Cop)         [sum, sum-of-squares] over this tile
# ----------------------------------------------------------------------------
def _conv_stats_kernel(xpad_ref, w_ref, y_ref, stats_ref, *,
                       TH, Wo, KH, KW, Cp, Cop):
    t = pl.program_id(1)
    row0 = pl.multiple_of(t * TH, TH)          # first padded input row of this tile
    acc = None
    for kw in range(KW):
        # One column shift per kw (hoisted out of the kh loop).
        cols = xpad_ref[0, pl.ds(row0, TH + KH - 1), kw:kw + Wo, :]   # (TH+KH-1, Wo, Cp)
        for kh in range(KH):
            patch = cols[kh:kh + TH].reshape(TH * Wo, Cp)             # cheap (Wo % 8 == 0)
            contrib = jnp.dot(patch, w_ref[kh * KW + kw],
                              preferred_element_type=jnp.float32)     # MXU, K = Cp = 128
            acc = contrib if acc is None else acc + contrib           # register accumulation
    y_ref[0] = acc.astype(y_ref.dtype)                                # single lane-dense store
    # Single-pass BatchNorm partial statistics for this block.
    s1 = jnp.sum(acc, axis=0, keepdims=True)
    s2 = jnp.sum(acc * acc, axis=0, keepdims=True)
    stats_ref[0, 0] = jnp.concatenate([s1, s2], axis=0)               # (2, Cop)


def conv2d_with_stats(x_nhwc, w_hwio, padding, row_tile=8):
    N, H, W, Cin = x_nhwc.shape
    KH, KW, _, Cout = w_hwio.shape
    Ho = H + 2 * padding - (KH - 1)
    Wo = W + 2 * padding - (KW - 1)
    Cp = _round_up(Cin, LANE)
    Cop = _round_up(Cout, LANE)

    # One combined pad pass: spatial zero padding + channel padding to lane width.
    # TODO(synk): fold the spatial zero padding into the kernel (boundary masking)
    # to avoid this extra HBM pass on very large activations.
    xpad = jnp.pad(x_nhwc.astype(jnp.float32),
                   ((0, 0), (padding, padding), (padding, padding), (0, Cp - Cin)))
    Hp, Wp = xpad.shape[1], xpad.shape[2]

    w = jnp.pad(w_hwio.astype(jnp.float32),
                ((0, 0), (0, 0), (0, Cp - Cin), (0, Cop - Cout)))
    w = w.reshape(KH * KW, Cp, Cop)

    # Row tile: largest divisor of Ho <= row_tile with a sublane-aligned flat tile.
    TH = Ho
    for cand in range(min(row_tile, Ho), 0, -1):
        if Ho % cand == 0 and (cand * Wo) % 8 == 0:
            TH = cand
            break
    T = Ho // TH

    kernel = functools.partial(_conv_stats_kernel, TH=TH, Wo=Wo, KH=KH, KW=KW,
                               Cp=Cp, Cop=Cop)

    y_flat, stats = pl.pallas_call(
        kernel,
        out_shape=(
            jax.ShapeDtypeStruct((N, Ho * Wo, Cop), jnp.float32),
            jax.ShapeDtypeStruct((N, T, 2, Cop), jnp.float32),
        ),
        grid_spec=pltpu.PrefetchScalarGridSpec(
            num_scalar_prefetch=0,
            grid=(N, T),
            in_specs=[
                # Whole padded image per batch element; rows are sliced in-kernel per
                # tile (fetched once per n since the block index is t-invariant).
                # TODO(synk): for very large images switch to halo'd row-tile DMA
                # (manual make_async_copy) so the input block also fits a VMEM budget.
                pl.BlockSpec((1, Hp, Wp, Cp), lambda n, t: (n, 0, 0, 0)),
                pl.BlockSpec((KH * KW, Cp, Cop), lambda n, t: (0, 0, 0)),
            ],
            out_specs=[
                pl.BlockSpec((1, TH * Wo, Cop), lambda n, t: (n, t, 0)),
                pl.BlockSpec((1, 1, 2, Cop), lambda n, t: (n, t, 0, 0)),
            ],
        ),
        compiler_params=pltpu.CompilerParams(
            dimension_semantics=("parallel", "parallel")),
    )(xpad, w)

    return y_flat, stats, Ho, Wo


# ----------------------------------------------------------------------------
# Kernel 2: BatchNorm apply (precomputed scale/shift) + ReLU, output in NCHW layout.
#   y_ref     : (1, SW, Cop)   conv output tile (f32, padded channels)
#   scale_ref : (1, Cop)       gamma * rsqrt(var + eps)
#   shift_ref : (1, Cop)       beta - mean * scale
#   o_ref     : (1, Cout, SW)  final output tile, channels on sublanes, H*W on lanes
# ----------------------------------------------------------------------------
def _bn_relu_nchw_kernel(y_ref, scale_ref, shift_ref, o_ref, *, Cout):
    y = y_ref[0]                                                # (SW, Cop) f32
    z = jnp.maximum(y * scale_ref[...] + shift_ref[...], 0.0)   # VPU
    zt = z.T                                                    # (Cop, SW) — XLU transpose
    o_ref[0] = zt[:Cout, :].astype(o_ref.dtype)                 # lane-dense NCHW store


def bn_relu_to_nchw(y_flat, scale, shift, Cout, out_dtype, spatial_tile=512):
    N, S, Cop = y_flat.shape
    if S <= spatial_tile:
        SW = S
    else:
        SW = spatial_tile
        assert S % SW == 0 and SW % LANE == 0, (S, SW)
    T = S // SW

    out = pl.pallas_call(
        functools.partial(_bn_relu_nchw_kernel, Cout=Cout),
        out_shape=jax.ShapeDtypeStruct((N, Cout, S), out_dtype),
        grid_spec=pltpu.PrefetchScalarGridSpec(
            num_scalar_prefetch=0,
            grid=(N, T),
            in_specs=[
                pl.BlockSpec((1, SW, Cop), lambda n, s: (n, s, 0)),
                pl.BlockSpec((1, Cop), lambda n, s: (0, 0)),
                pl.BlockSpec((1, Cop), lambda n, s: (0, 0)),
            ],
            out_specs=pl.BlockSpec((1, Cout, SW), lambda n, s: (n, 0, s)),
        ),
        compiler_params=pltpu.CompilerParams(
            dimension_semantics=("parallel", "parallel")),
    )(y_flat, scale, shift)
    return out


# ----------------------------------------------------------------------------
# BasicConv forward: NCHW in, NCHW out (matches PyTorch module interface).
# ----------------------------------------------------------------------------
def basic_conv_forward(x_nchw, weight_oihw, gamma, beta, padding=1, eps=1e-5):
    N, Cin, H, W = x_nchw.shape
    Cout = weight_oihw.shape[0]

    x_nhwc = jnp.transpose(x_nchw, (0, 2, 3, 1))
    w_hwio = jnp.transpose(weight_oihw, (2, 3, 1, 0))

    y_flat, stats, Ho, Wo = conv2d_with_stats(x_nhwc, w_hwio, padding)
    Cop = y_flat.shape[-1]

    # Finalize training-mode BatchNorm coefficients (biased batch variance) from the
    # per-block partial sums — a tiny (N*T, 2, Cop) reduction done in plain JAX.
    count = N * Ho * Wo
    s = jnp.sum(stats, axis=(0, 1))                       # (2, Cop)
    mean = s[0] / count
    var = jnp.maximum(s[1] / count - mean * mean, 0.0)
    inv = jax.lax.rsqrt(var + eps)
    gamma_p = jnp.pad(gamma.astype(jnp.float32), (0, Cop - Cout))
    beta_p = jnp.pad(beta.astype(jnp.float32), (0, Cop - Cout))
    scale = (gamma_p * inv).reshape(1, Cop)
    shift = (beta_p - mean * gamma_p * inv).reshape(1, Cop)

    out_flat = bn_relu_to_nchw(y_flat, scale, shift, Cout, x_nchw.dtype)
    return out_flat.reshape(N, Cout, Ho, Wo)              # free reshape, no transpose


# ----------------------------------------------------------------------------
# Pure-JAX reference (same semantics) for a correctness check.
# ----------------------------------------------------------------------------
def basic_conv_reference(x_nchw, weight_oihw, gamma, beta, padding=1, eps=1e-5):
    y = jax.lax.conv_general_dilated(
        x_nchw, weight_oihw, window_strides=(1, 1),
        padding=((padding, padding), (padding, padding)),
        dimension_numbers=("NCHW", "OIHW", "NCHW"))
    mean = jnp.mean(y, axis=(0, 2, 3), keepdims=True)
    var = jnp.mean((y - mean) ** 2, axis=(0, 2, 3), keepdims=True)
    yn = (y - mean) * jax.lax.rsqrt(var + eps)
    yn = yn * gamma.reshape(1, -1, 1, 1) + beta.reshape(1, -1, 1, 1)
    return jnp.maximum(yn, 0.0)


if __name__ == "__main__":
    # BasicConv(in_planes=4, out_planes=8, kernel_size=3, padding=1)
    N, Cin, H, W = 2, 4, 16, 16
    Cout, K, pad = 8, 3, 1

    key = jax.random.PRNGKey(0)
    kx, kw, kg, kb = jax.random.split(key, 4)

    x = jax.random.normal(kx, (N, Cin, H, W), dtype=jnp.float32)
    # Conv2d weight (out, in, kh, kw), bias=False; deterministic synthetic init.
    weight = jax.random.normal(kw, (Cout, Cin, K, K), dtype=jnp.float32) * 0.1
    # BatchNorm2d affine params (out_planes,).
    gamma = 1.0 + 0.1 * jax.random.normal(kg, (Cout,), dtype=jnp.float32)
    beta = 0.1 * jax.random.normal(kb, (Cout,), dtype=jnp.float32)

    out = basic_conv_forward(x, weight, gamma, beta, padding=pad)
    out = jax.block_until_ready(out)

    ref = basic_conv_reference(x, weight, gamma, beta, padding=pad)
    assert out.shape == (N, Cout, H, W), out.shape
    assert jnp.allclose(out, ref, atol=2e-4, rtol=2e-4), (
        float(jnp.max(jnp.abs(out - ref))))

    print("KERNEL_OK")
</pallas_src>

<mosaic_0001>
module attributes {stable_mosaic.version = 11 : i64} {
  func.func @_conv_stats_kernel(%arg0: i32, %arg1: i32, %arg2: memref<1x18x18x128xf32, #tpu.memory_space<vmem>>, %arg3: memref<9x128x128xf32, #tpu.memory_space<vmem>>, %arg4: memref<1x128x128xf32, #tpu.memory_space<vmem>>, %arg5: memref<1x1x2x128xf32, #tpu.memory_space<vmem>>) attributes {dimension_semantics = [#tpu.dimension_semantics<parallel>, #tpu.dimension_semantics<parallel>], iteration_bounds = array<i64: 2, 2>, scalar_prefetch = 0 : i64, scratch_operands = 0 : i64, tpu.core_type = #tpu.core_type<tc>, window_params = [{transform_indices = @transform_0, window_bounds = array<i64: 1, 18, 18, 128>}, {pipeline_mode = #tpu.pipeline_mode<synchronous>, transform_indices = @transform_1, window_bounds = array<i64: 9, 128, 128>}, {transform_indices = @transform_2, window_bounds = array<i64: 1, 128, 128>}, {transform_indices = @transform_3, window_bounds = array<i64: 1, 1, 2, 128>}]} {
    %c8_i32 = arith.constant 8 : i32
    %0 = arith.muli %arg1, %c8_i32 : i32
    %1 = tpu.assume_multiple %0, 8 : i32
    %c0 = arith.constant 0 : index
    %2 = arith.index_cast %1 : i32 to index
    %c0_0 = arith.constant 0 : index
    %c0_1 = arith.constant 0 : index
    %3 = vector.load %arg2[%c0, %2, %c0_0, %c0_1] : memref<1x18x18x128xf32, #tpu.memory_space<vmem>>, vector<1x10x16x128xf32>
    %4 = vector.shape_cast %3 : vector<1x10x16x128xf32> to vector<10x16x128xf32>
    %5 = vector.extract_strided_slice %4 {offsets = [0, 0, 0], sizes = [8, 16, 128], strides = [1, 1, 1]} : vector<10x16x128xf32> to vector<8x16x128xf32>
    %6 = vector.shape_cast %5 : vector<8x16x128xf32> to vector<128x128xf32>
    %c0_2 = arith.constant 0 : index
    %c0_3 = arith.constant 0 : index
    %c0_4 = arith.constant 0 : index
    %7 = vector.load %arg3[%c0_2, %c0_3, %c0_4] : memref<9x128x128xf32, #tpu.memory_space<vmem>>, vector<1x128x128xf32>
    %8 = vector.shape_cast %7 : vector<1x128x128xf32> to vector<128x128xf32>
    %cst = arith.constant dense<0.000000e+00> : vector<128x128xf32>
    %9 = tpu.matmul %6, %8, %cst {dimension_numbers = #tpu.dot_dimension_numbers<[1], [0], [0], [1], [0, 0, 1, 1], [], []>} : vector<128x128xf32>, vector<128x128xf32>, vector<128x128xf32> -> vector<128x128xf32>
    %10 = vector.extract_strided_slice %4 {offsets = [1, 0, 0], sizes = [8, 16, 128], strides = [1, 1, 1]} : vector<10x16x128xf32> to vector<8x16x128xf32>
    %11 = vector.shape_cast %10 : vector<8x16x128xf32> to vector<128x128xf32>
    %c3 = arith.constant 3 : index
    %c0_5 = arith.constant 0 : index
    %c0_6 = arith.constant 0 : index
    %12 = vector.load %arg3[%c3, %c0_5, %c0_6] : memref<9x128x128xf32, #tpu.memory_space<vmem>>, vector<1x128x128xf32>
    %13 = vector.shape_cast %12 : vector<1x128x128xf32> to vector<128x128xf32>
    %cst_7 = arith.constant dense<0.000000e+00> : vector<128x128xf32>
    %14 = tpu.matmul %11, %13, %cst_7 {dimension_numbers = #tpu.dot_dimension_numbers<[1], [0], [0], [1], [0, 0, 1, 1], [], []>} : vector<128x128xf32>, vector<128x128xf32>, vector<128x128xf32> -> vector<128x128xf32>
    %15 = arith.addf %9, %14 : vector<128x128xf32>
    %16 = vector.extract_strided_slice %4 {offsets = [2, 0, 0], sizes = [8, 16, 128], strides = [1, 1, 1]} : vector<10x16x128xf32> to vector<8x16x128xf32>
    %17 = vector.shape_cast %16 : vector<8x16x128xf32> to vector<128x128xf32>
    %c6 = arith.constant 6 : index
    %c0_8 = arith.constant 0 : index
    %c0_9 = arith.constant 0 : index
    %18 = vector.load %arg3[%c6, %c0_8, %c0_9] : memref<9x128x128xf32, #tpu.memory_space<vmem>>, vector<1x128x128xf32>
    %19 = vector.shape_cast %18 : vector<1x128x128xf32> to vector<128x128xf32>
    %cst_10 = arith.constant dense<0.000000e+00> : vector<128x128xf32>
    %20 = tpu.matmul %17, %19, %cst_10 {dimension_numbers = #tpu.dot_dimension_numbers<[1], [0], [0], [1], [0, 0, 1, 1], [], []>} : vector<128x128xf32>, vector<128x128xf32>, vector<128x128xf32> -> vector<128x128xf32>
    %21 = arith.addf %15, %20 : vector<128x128xf32>
    %c0_11 = arith.constant 0 : index
    %22 = arith.index_cast %1 : i32 to index
    %c1 = arith.constant 1 : index
    %c0_12 = arith.constant 0 : index
    %23 = vector.load %arg2[%c0_11, %22, %c1, %c0_12] : memref<1x18x18x128xf32, #tpu.memory_space<vmem>>, vector<1x10x16x128xf32>
    %24 = vector.shape_cast %23 : vector<1x10x16x128xf32> to vector<10x16x128xf32>
    %25 = vector.extract_strided_slice %24 {offsets = [0, 0, 0], sizes = [8, 16, 128], strides = [1, 1, 1]} : vector<10x16x128xf32> to vector<8x16x128xf32>
    %26 = vector.shape_cast %25 : vector<8x16x128xf32> to vector<128x128xf32>
    %c1_13 = arith.constant 1 : index
    %c0_14 = arith.constant 0 : index
    %c0_15 = arith.constant 0 : index
    %27 = vector.load %arg3[%c1_13, %c0_14, %c0_15] : memref<9x128x128xf32, #tpu.memory_space<vmem>>, vector<1x128x128xf32>
    %28 = vector.shape_cast %27 : vector<1x128x128xf32> to vector<128x128xf32>
    %cst_16 = arith.constant dense<0.000000e+00> : vector<128x128xf32>
    %29 = tpu.matmul %26, %28, %cst_16 {dimension_numbers = #tpu.dot_dimension_numbers<[1], [0], [0], [1], [0, 0, 1, 1], [], []>} : vector<128x128xf32>, vector<128x128xf32>, vector<128x128xf32> -> vector<128x128xf32>
    %30 = arith.addf %21, %29 : vector<128x128xf32>
    %31 = vector.extract_strided_slice %24 {offsets = [1, 0, 0], sizes = [8, 16, 128], strides = [1, 1, 1]} : vector<10x16x128xf32> to vector<8x16x128xf32>
    %32 = vector.shape_cast %31 : vector<8x16x128xf32> to vector<128x128xf32>
    %c4 = arith.constant 4 : index
    %c0_17 = arith.constant 0 : index
    %c0_18 = arith.constant 0 : index
    %33 = vector.load %arg3[%c4, %c0_17, %c0_18] : memref<9x128x128xf32, #tpu.memory_space<vmem>>, vector<1x128x128xf32>
    %34 = vector.shape_cast %33 : vector<1x128x128xf32> to vector<128x128xf32>
    %cst_19 = arith.constant dense<0.000000e+00> : vector<128x128xf32>
    %35 = tpu.matmul %32, %34, %cst_19 {dimension_numbers = #tpu.dot_dimension_numbers<[1], [0], [0], [1], [0, 0, 1, 1], [], []>} : vector<128x128xf32>, vector<128x128xf32>, vector<128x128xf32> -> vector<128x128xf32>
    %36 = arith.addf %30, %35 : vector<128x128xf32>
    %37 = vector.extract_strided_slice %24 {offsets = [2, 0, 0], sizes = [8, 16, 128], strides = [1, 1, 1]} : vector<10x16x128xf32> to vector<8x16x128xf32>
    %38 = vector.shape_cast %37 : vector<8x16x128xf32> to vector<128x128xf32>
    %c7 = arith.constant 7 : index
    %c0_20 = arith.constant 0 : index
    %c0_21 = arith.constant 0 : index
    %39 = vector.load %arg3[%c7, %c0_20, %c0_21] : memref<9x128x128xf32, #tpu.memory_space<vmem>>, vector<1x128x128xf32>
    %40 = vector.shape_cast %39 : vector<1x128x128xf32> to vector<128x128xf32>
    %cst_22 = arith.constant dense<0.000000e+00> : vector<128x128xf32>
    %41 = tpu.matmul %38, %40, %cst_22 {dimension_numbers = #tpu.dot_dimension_numbers<[1], [0], [0], [1], [0, 0, 1, 1], [], []>} : vector<128x128xf32>, vector<128x128xf32>, vector<128x128xf32> -> vector<128x128xf32>
    %42 = arith.addf %36, %41 : vector<128x128xf32>
    %c0_23 = arith.constant 0 : index
    %43 = arith.index_cast %1 : i32 to index
    %c2 = arith.constant 2 : index
    %c0_24 = arith.constant 0 : index
    %44 = vector.load %arg2[%c0_23, %43, %c2, %c0_24] : memref<1x18x18x128xf32, #tpu.memory_space<vmem>>, vector<1x10x16x128xf32>
    %45 = vector.shape_cast %44 : vector<1x10x16x128xf32> to vector<10x16x128xf32>
    %46 = vector.extract_strided_slice %45 {offsets = [0, 0, 0], sizes = [8, 16, 128], strides = [1, 1, 1]} : vector<10x16x128xf32> to vector<8x16x128xf32>
    %47 = vector.shape_cast %46 : vector<8x16x128xf32> to vector<128x128xf32>
    %c2_25 = arith.constant 2 : index
    %c0_26 = arith.constant 0 : index
    %c0_27 = arith.constant 0 : index
    %48 = vector.load %arg3[%c2_25, %c0_26, %c0_27] : memref<9x128x128xf32, #tpu.memory_space<vmem>>, vector<1x128x128xf32>
    %49 = vector.shape_cast %48 : vector<1x128x128xf32> to vector<128x128xf32>
    %cst_28 = arith.constant dense<0.000000e+00> : vector<128x128xf32>
    %50 = tpu.matmul %47, %49, %cst_28 {dimension_numbers = #tpu.dot_dimension_numbers<[1], [0], [0], [1], [0, 0, 1, 1], [], []>} : vector<128x128xf32>, vector<128x128xf32>, vector<128x128xf32> -> vector<128x128xf32>
    %51 = arith.addf %42, %50 : vector<128x128xf32>
    %52 = vector.extract_strided_slice %45 {offsets = [1, 0, 0], sizes = [8, 16, 128], strides = [1, 1, 1]} : vector<10x16x128xf32> to vector<8x16x128xf32>
    %53 = vector.shape_cast %52 : vector<8x16x128xf32> to vector<128x128xf32>
    %c5 = arith.constant 5 : index
    %c0_29 = arith.constant 0 : index
    %c0_30 = arith.constant 0 : index
    %54 = vector.load %arg3[%c5, %c0_29, %c0_30] : memref<9x128x128xf32, #tpu.memory_space<vmem>>, vector<1x128x128xf32>
    %55 = vector.shape_cast %54 : vector<1x128x128xf32> to vector<128x128xf32>
    %cst_31 = arith.constant dense<0.000000e+00> : vector<128x128xf32>
    %56 = tpu.matmul %53, %55, %cst_31 {dimension_numbers = #tpu.dot_dimension_numbers<[1], [0], [0], [1], [0, 0, 1, 1], [], []>} : vector<128x128xf32>, vector<128x128xf32>, vector<128x128xf32> -> vector<128x128xf32>
    %57 = arith.addf %51, %56 : vector<128x128xf32>
    %58 = vector.extract_strided_slice %45 {offsets = [2, 0, 0], sizes = [8, 16, 128], strides = [1, 1, 1]} : vector<10x16x128xf32> to vector<8x16x128xf32>
    %59 = vector.shape_cast %58 : vector<8x16x128xf32> to vector<128x128xf32>
    %c8 = arith.constant 8 : index
    %c0_32 = arith.constant 0 : index
    %c0_33 = arith.constant 0 : index
    %60 = vector.load %arg3[%c8, %c0_32, %c0_33] : memref<9x128x128xf32, #tpu.memory_space<vmem>>, vector<1x128x128xf32>
    %61 = vector.shape_cast %60 : vector<1x128x128xf32> to vector<128x128xf32>
    %cst_34 = arith.constant dense<0.000000e+00> : vector<128x128xf32>
    %62 = tpu.matmul %59, %61, %cst_34 {dimension_numbers = #tpu.dot_dimension_numbers<[1], [0], [0], [1], [0, 0, 1, 1], [], []>} : vector<128x128xf32>, vector<128x128xf32>, vector<128x128xf32> -> vector<128x128xf32>
    %63 = arith.addf %57, %62 : vector<128x128xf32>
    %c0_35 = arith.constant 0 : index
    %c0_36 = arith.constant 0 : index
    %c0_37 = arith.constant 0 : index
    %64 = vector.load %arg4[%c0_35, %c0_36, %c0_37] : memref<1x128x128xf32, #tpu.memory_space<vmem>>, vector<1x128x128xf32>
    %65 = vector.shape_cast %64 : vector<1x128x128xf32> to vector<128x128xf32>
    %66 = vector.shape_cast %63 : vector<128x128xf32> to vector<1x128x128xf32>
    tpu.vector_store %arg4[%c0_35, %c0_36, %c0_37], %66 {strides = array<i32>} : memref<1x128x128xf32, #tpu.memory_space<vmem>>, vector<1x128x128xf32>,
    %cst_38 = arith.constant dense<0.000000e+00> : vector<128xf32>
    %67 = vector.multi_reduction <add>, %63, %cst_38 [0] : vector<128x128xf32> to vector<128xf32>
    %68 = vector.shape_cast %67 : vector<128xf32> to vector<1x128xf32>
    %69 = arith.mulf %63, %63 : vector<128x128xf32>
    %cst_39 = arith.constant dense<0.000000e+00> : vector<128xf32>
    %70 = vector.multi_reduction <add>, %69, %cst_39 [0] : vector<128x128xf32> to vector<128xf32>
    %71 = vector.shape_cast %70 : vector<128xf32> to vector<1x128xf32>
    %72 = tpu.concatenate %68, %71 in 0 : vector<1x128xf32>, vector<1x128xf32> -> vector<2x128xf32>
    %c0_40 = arith.constant 0 : index
    %c0_41 = arith.constant 0 : index
    %c0_42 = arith.constant 0 : index
    %c0_43 = arith.constant 0 : index
    %73 = vector.load %arg5[%c0_40, %c0_41, %c0_42, %c0_43] : memref<1x1x2x128xf32, #tpu.memory_space<vmem>>, vector<1x1x2x128xf32>
    %74 = vector.shape_cast %73 : vector<1x1x2x128xf32> to vector<2x128xf32>
    %75 = vector.shape_cast %72 : vector<2x128xf32> to vector<1x1x2x128xf32>
    tpu.vector_store %arg5[%c0_40, %c0_41, %c0_42, %c0_43], %75 {strides = array<i32>} : memref<1x1x2x128xf32, #tpu.memory_space<vmem>>, vector<1x1x2x128xf32>,
    return
  }
  func.func @transform_0(%arg0: i32, %arg1: i32) -> (i32, i32, i32, i32) {
    %c0_i32 = arith.constant 0 : i32
    %c0_i32_0 = arith.constant 0 : i32
    %c0_i32_1 = arith.constant 0 : i32
    %c0_i32_2 = arith.constant 0 : i32
    return %arg0, %c0_i32, %c0_i32_0, %c0_i32_1 : i32, i32, i32, i32
  }
  func.func @transform_1(%arg0: i32, %arg1: i32) -> (i32, i32, i32) {
    %c0_i32 = arith.constant 0 : i32
    %c0_i32_0 = arith.constant 0 : i32
    %c0_i32_1 = arith.constant 0 : i32
    %c0_i32_2 = arith.constant 0 : i32
    return %c0_i32, %c0_i32_0, %c0_i32_1 : i32, i32, i32
  }
  func.func @transform_2(%arg0: i32, %arg1: i32) -> (i32, i32, i32) {
    %c0_i32 = arith.constant 0 : i32
    %c0_i32_0 = arith.constant 0 : i32
    return %arg0, %arg1, %c0_i32 : i32, i32, i32
  }
  func.func @transform_3(%arg0: i32, %arg1: i32) -> (i32, i32, i32, i32) {
    %c0_i32 = arith.constant 0 : i32
    %c0_i32_0 = arith.constant 0 : i32
    %c0_i32_1 = arith.constant 0 : i32
    return %arg0, %arg1, %c0_i32, %c0_i32_0 : i32, i32, i32, i32
  }
}

</mosaic_0001>

<llo_original>
// kernel: tpu_custom_call.1
$region0: #{tpu_custom_call.1}
  #allocation0 [shape = 'u32[]', space=smem, size = 0x4, offset = 0x4, fixed_abs, tag = 'smem constant byte address 0x4 - core index']
  #allocation1 [shape = 'u32[72,128]{1,0:T(1,128)}', space=vmem, size = 0x9000, scoped, tag = 'internal scratch']
  %s0 = inlined_call_operand.vmem [shape: f32[2,18,18,128], index: 0, kind: input, shape index: {}]
  %s1 = inlined_call_operand.vmem [shape: f32[9,128,128], index: 1, kind: input, shape index: {}]
  %s2 = inlined_call_operand.hbm [shape: f32[2,256,128], index: 2, kind: output, shape index: {0}]
  %s3 = inlined_call_operand.hbm [shape: f32[2,2,2,128], index: 3, kind: output, shape index: {1}]
  %4 = xla_tuple %s2, %s3
  %s5 = sld [smem:[#allocation0]]
  $region49: #{tpu_custom_call.1} parent=0
    _
  %s7 = ssub.s32 1, %s5
  %s8 = scalar_select 0, %s7, %s5
  $region1: #{tpu_custom_call.1} parent=0
    #allocation2 [shape = 'u8[131072]{0}', space=vmem, size = 0x20000, scoped, tag = 'output window, operand 0']
    #allocation3 [shape = 's32[2]{0}', space=sflag, size = 0x8, scoped, tag = 'scoped memory for tpu_custom_call.1']
    #allocation4 [shape = 'u8[2048]{0}', space=vmem, size = 0x800, scoped, tag = 'output window, operand 1']
    #allocation5 [shape = 's32[2]{0}', space=sflag, size = 0x8, scoped, tag = 'scoped memory for tpu_custom_call.1']
    %9 = vsyncpa [#allocation3], 0
    %s10 = scalar_lea.sflag [#allocation3], 1
    %11 = vsyncpa %s10, 0
    %12 = vsyncpa [#allocation5], 0
    %s13 = scalar_lea.sflag [#allocation5], 1
    %14 = vsyncpa %s13, 0
    loop: start=0, step=1, limit=6
    $region2: #{tpu_custom_call.1} parent=1 // loop_pre_header
      _
    $region3: #{tpu_custom_call.1} parent=1 // loop_header
      %s16 = sphi 0, %s20
      %p17 = scmp.ge.s32.totalorder %s16, 6
      %s23 = sphi 0, %s35
      %s24 = sphi 0, %s31
      %s25 = sphi 0, %s23
      %s26 = sphi 0, %s24
      %s27 = sphi 0, %s25
      %s28 = sphi 0, %s26
      %s38 = sphi 0, %s40
      %s41 = sphi 0, %s38
      %s42 = sphi 0, %s41
      %s58 = sphi 0, %s42
      %s62 = sphi 0, %s62
      %s64 = sphi 0, %s62
      %s65 = sphi 0, %s64
      %s79 = sphi 0, %s65
      %s87 = sphi 0, %s89
      %s90 = sphi 0, %s87
      %s91 = sphi 0, %s90
      %s107 = sphi 0, %s91
      %s115 = sphi 0, %s117
      %s118 = sphi 0, %s115
      %s119 = sphi 0, %s118
      %s135 = sphi 0, %s119
    $region4: #{tpu_custom_call.1} parent=1 // loop_header_branch
      %19 = sbr.rel (%p17) target = $region8
    $region5: #{tpu_custom_call.1} parent=1 // loop_body
      %s21 = ssub.s32 %s16, 1
      %s22 = ssub.s32 %s16, 2
      %s29 = sadd.s32 1, %s24
      %p30 = scmp.ge.s32.totalorder %s29, 2
      %s31 = scalar_select %p30, 0, %s29
      %s32 = sadd.s32 1, %s23
      %s33 = scalar_select %p30, %s32, %s23
      %p34 = scmp.ge.s32.totalorder %s33, 2
      %s35 = scalar_select %p34, 0, %s33
      %s36 = ssub.s32 %s23, %s35
      %p37 = scmp.eq.s32.totalorder %s36, 0
      %s39 = sadd.s32 %s38, 1
      %s40 = scalar_select %p37, %s38, %s39
      %p43 = pneg %p37
      %p44 = scmp.eq.s32.totalorder %s16, 3
      %p45 = por %p43, %p44
      %p46 = scmp.ne.s32.totalorder %s38, %s41
      %p47 = scmp.eq.s32.totalorder %s16, 0
      %p48 = por %p46, %p47
      %p49 = scmp.ne.s32.totalorder %s38, %s41
      %p50 = scmp.eq.s32.totalorder %s21, 3
      %p51 = por %p49, %p50
      %p52 = scmp.ne.s32.totalorder %s41, %s42
      %p53 = scmp.eq.s32.totalorder %s21, 0
      %p54 = por %p52, %p53
      %p55 = scmp.ne.s32.totalorder %s41, %s42
      %p56 = scmp.eq.s32.totalorder %s22, 3
      %p57 = por %p55, %p56
      %p59 = scmp.ne.s32.totalorder %s42, %s58
      %p60 = scmp.eq.s32.totalorder %s22, 0
      %p61 = por %p59, %p60
      %s63 = sadd.s32 %s62, 1
      %p66 = scmp.eq.s32.totalorder %s16, 3
      %p67 = scmp.ne.s32.totalorder %s62, %s64
      %p68 = scmp.eq.s32.totalorder %s16, 0
      %p69 = por %p67, %p68
      %p70 = scmp.ne.s32.totalorder %s62, %s64
      %p71 = scmp.eq.s32.totalorder %s21, 3
      %p72 = por %p70, %p71
      %p73 = scmp.ne.s32.totalorder %s64, %s65
      %p74 = scmp.eq.s32.totalorder %s21, 0
      %p75 = por %p73, %p74
      %p76 = scmp.ne.s32.totalorder %s64, %s65
      %p77 = scmp.eq.s32.totalorder %s22, 3
      %p78 = por %p76, %p77
      %p80 = scmp.ne.s32.totalorder %s65, %s79
      %p81 = scmp.eq.s32.totalorder %s22, 0
      %p82 = por %p80, %p81
      %s83 = ssub.s32 %s23, %s35
      %s84 = ssub.s32 %s24, %s31
      %s85 = sor.u32 %s83, %s84
      %p86 = scmp.eq.s32.totalorder %s85, 0
      %s88 = sadd.s32 %s87, 1
      %s89 = scalar_select %p86, %s87, %s88
      %p92 = pneg %p86
      %p93 = scmp.eq.s32.totalorder %s16, 3
      %p94 = por %p92, %p93
      %p95 = scmp.ne.s32.totalorder %s87, %s90
      %p96 = scmp.eq.s32.totalorder %s16, 0
      %p97 = por %p95, %p96
      %p98 = scmp.ne.s32.totalorder %s87, %s90
      %p99 = scmp.eq.s32.totalorder %s21, 3
      %p100 = por %p98, %p99
      %p101 = scmp.ne.s32.totalorder %s90, %s91
      %p102 = scmp.eq.s32.totalorder %s21, 0
      %p103 = por %p101, %p102
      %p104 = scmp.ne.s32.totalorder %s90, %s91
      %p105 = scmp.eq.s32.totalorder %s22, 3
      %p106 = por %p104, %p105
      %p108 = scmp.ne.s32.totalorder %s91, %s107
      %p109 = scmp.eq.s32.totalorder %s22, 0
      %p110 = por %p108, %p109
      %s111 = ssub.s32 %s23, %s35
      %s112 = ssub.s32 %s24, %s31
      %s113 = sor.u32 %s111, %s112
      %p114 = scmp.eq.s32.totalorder %s113, 0
      %s116 = sadd.s32 %s115, 1
      %s117 = scalar_select %p114, %s115, %s116
      %p120 = pneg %p114
      %p121 = scmp.eq.s32.totalorder %s16, 3
      %p122 = por %p120, %p121
      %p123 = scmp.ne.s32.totalorder %s115, %s118
      %p124 = scmp.eq.s32.totalorder %s16, 0
      %p125 = por %p123, %p124
      %p126 = scmp.ne.s32.totalorder %s115, %s118
      %p127 = scmp.eq.s32.totalorder %s21, 3
      %p128 = por %p126, %p127
      %p129 = scmp.ne.s32.totalorder %s118, %s119
      %p130 = scmp.eq.s32.totalorder %s21, 0
      %p131 = por %p129, %p130
      %p132 = scmp.ne.s32.totalorder %s118, %s119
      %p133 = scmp.eq.s32.totalorder %s22, 3
      %p134 = por %p132, %p133
      %p136 = scmp.ne.s32.totalorder %s119, %s135
      %p137 = scmp.eq.s32.totalorder %s22, 0
      %p138 = por %p136, %p137
      %p139 = scmp.le.s32.totalorder 1, %s16
      %p140 = scmp.lt.s32.totalorder %s16, 5
      %p141 = pnand %p139, %p140
      %p142 = pneg %p141
      // Predicated region
      $region9: #{tpu_custom_call.1} parent=5 // pred_check
        _
      $region10: #{tpu_custom_call.1} parent=5 // pred_check_branch
        %144 = sbr.rel (%p141) target = $region12
      $region11: #{tpu_custom_call.1} parent=5 // pred_region
        %s145 = ssub.s32 %s16, 1
        // Predicated region
        $region13: #{tpu_custom_call.1} parent=11 // pred_check
          %p146 = pneg %p75
        $region14: #{tpu_custom_call.1} parent=11 // pred_check_branch
          %148 = sbr.rel (%p146) target = $region16
        $region15: #{tpu_custom_call.1} parent=11 // pred_region
          _
        $region16: #{tpu_custom_call.1} parent=11 // pred_fallthru
          _
      $region12: #{tpu_custom_call.1} parent=5 // pred_fallthru
        _
      %p149 = scmp.lt.s32.totalorder %s16, 4
      // Predicated region
      $region17: #{tpu_custom_call.1} parent=5 // pred_check
        %p150 = pneg %p149
      $region18: #{tpu_custom_call.1} parent=5 // pred_check_branch
        %152 = sbr.rel (%p150) target = $region20
      $region19: #{tpu_custom_call.1} parent=5 // pred_region
        // Predicated region
        $region21: #{tpu_custom_call.1} parent=19 // pred_check
          %p153 = pneg %p48
        $region22: #{tpu_custom_call.1} parent=19 // pred_check_branch
          %155 = sbr.rel (%p153) target = $region24
        $region23: #{tpu_custom_call.1} parent=19 // pred_region
          %p156 = scmp.lt.s32.totalorder %s23, 1
          %s157 = scalar_select %p156, %s23, 1
          %s158 = smul.addr %s157, 54
          %s159 = smul.addr %s158, 8
          %s160 = scalar_lea.vmem %s0, %s159
        $region24: #{tpu_custom_call.1} parent=19 // pred_fallthru
          _
      $region20: #{tpu_custom_call.1} parent=5 // pred_fallthru
        _
      %p161 = scmp.le.s32.totalorder 1, %s16
      %p162 = scmp.lt.s32.totalorder %s16, 5
      %p163 = pnand %p161, %p162
      %p164 = pneg %p163
      // Predicated region
      $region25: #{tpu_custom_call.1} parent=5 // pred_check
        _
      $region26: #{tpu_custom_call.1} parent=5 // pred_check_branch
        %166 = sbr.rel (%p163) target = $region28
      $region27: #{tpu_custom_call.1} parent=5 // pred_region
        %s167 = ssub.s32 %s16, 1
        %p168 = scmp.lt.s32.totalorder %s25, 1
        %s169 = scalar_select %p168, %s25, 1
        %s170 = smul.addr %s169, 54
        %s171 = smul.addr %s170, 8
        %s172 = scalar_lea.vmem %s0, %s171
        %p173 = pneg %p54
        %p174 = pneg %p51
        %p175 = pneg %p75
        %p176 = pneg %p72
        %p177 = pneg %p103
        %p178 = pneg %p100
        %s179 = sand.u32 %s90, 1
        %s180 = scalar_lea.sflag [#allocation3], %s179
        %s181 = sand.u32 %s90, 1
        %s182 = smul.addr %s181, 128
        %s183 = scalar_lea.vmem [#allocation2], %s182
        %p184 = pneg %p131
        %p185 = pneg %p128
        %s186 = sand.u32 %s118, 1
        %s187 = scalar_lea.sflag [#allocation5], %s186
        %s188 = sand.u32 %s118, 1
        %s189 = smul.addr %s188, 2
        %s190 = scalar_lea.vmem [#allocation4], %s189
        %p191 = scmp.lt.s32.totalorder %s25, 1
        %s192 = scalar_select %p191, %s25, 1
        %s193 = smul.addr %s192, 54
        %s194 = smul.addr %s193, 8
        %s195 = scalar_lea.vmem %s0, %s194
        %s196 = smul.u32 16, %s26
        %s197 = smul.u32 %s26, 8
        %s198 = smul.u32 %s197, 24
        %s199 = scalar_lea.vmem %s195, %s198
        %v200 = vld [vmem:[%s199] sm:$0xff]
        %v201 = vld [vmem:[%s199 + $0x8] sm:$0xff]
        %v202 = vld [vmem:[%s199 + $0x18] sm:$0xff]
        %v203 = vld [vmem:[%s199 + $0x20] sm:$0xff]
        %v204 = vld [vmem:[%s199 + $0x30] sm:$0xff]
        %v205 = vld [vmem:[%s199 + $0x38] sm:$0xff]
        %v206 = vld [vmem:[%s199 + $0x48] sm:$0xff]
        %v207 = vld [vmem:[%s199 + $0x50] sm:$0xff]
        %v208 = vld [vmem:[%s199 + $0x60] sm:$0xff]
        %v209 = vld [vmem:[%s199 + $0x68] sm:$0xff]
        %v210 = vld [vmem:[%s199 + $0x78] sm:$0xff]
        %v211 = vld [vmem:[%s199 + $0x80] sm:$0xff]
        %v212 = vld [vmem:[%s199 + $0x90] sm:$0xff]
        %v213 = vld [vmem:[%s199 + $0x98] sm:$0xff]
        %v214 = vld [vmem:[%s199 + $0xa8] sm:$0xff]
        %v215 = vld [vmem:[%s199 + $0xb0] sm:$0xff]
        %v216 = vld [vmem:[%s199 + $0xc0] sm:$0xff]
        %v217 = vld [vmem:[%s199 + $0xc8] sm:$0xff]
        %v218 = vld [vmem:[%s199 + $0xd8] sm:$0xff]
        %v219 = vld [vmem:[%s199 + $0xe0] sm:$0xff]
        %v220 = vld [vmem:[%s1] sm:$0xff]
        %v221 = vld [vmem:[%s1 + $0x8] sm:$0xff]
        %v222 = vld [vmem:[%s1 + $0x10] sm:$0xff]
        %v223 = vld [vmem:[%s1 + $0x18] sm:$0xff]
        %v224 = vld [vmem:[%s1 + $0x20] sm:$0xff]
        %v225 = vld [vmem:[%s1 + $0x28] sm:$0xff]
        %v226 = vld [vmem:[%s1 + $0x30] sm:$0xff]
        %v227 = vld [vmem:[%s1 + $0x38] sm:$0xff]
        %v228 = vld [vmem:[%s1 + $0x40] sm:$0xff]
        %v229 = vld [vmem:[%s1 + $0x48] sm:$0xff]
        %v230 = vld [vmem:[%s1 + $0x50] sm:$0xff]
        %v231 = vld [vmem:[%s1 + $0x58] sm:$0xff]
        %v232 = vld [vmem:[%s1 + $0x60] sm:$0xff]
        %v233 = vld [vmem:[%s1 + $0x68] sm:$0xff]
        %v234 = vld [vmem:[%s1 + $0x70] sm:$0xff]
        %v235 = vld [vmem:[%s1 + $0x78] sm:$0xff]
        %s236 = scalar_lea.vmem %s1, 384
        %v237 = vld [vmem:[%s236] sm:$0xff]
        %v238 = vld [vmem:[%s236 + $0x8] sm:$0xff]
        %v239 = vld [vmem:[%s236 + $0x10] sm:$0xff]
        %v240 = vld [vmem:[%s236 + $0x18] sm:$0xff]
        %v241 = vld [vmem:[%s236 + $0x20] sm:$0xff]
        %v242 = vld [vmem:[%s236 + $0x28] sm:$0xff]
        %v243 = vld [vmem:[%s236 + $0x30] sm:$0xff]
        %v244 = vld [vmem:[%s236 + $0x38] sm:$0xff]
        %v245 = vld [vmem:[%s236 + $0x40] sm:$0xff]
        %v246 = vld [vmem:[%s236 + $0x48] sm:$0xff]
        %v247 = vld [vmem:[%s236 + $0x50] sm:$0xff]
        %v248 = vld [vmem:[%s236 + $0x58] sm:$0xff]
        %v249 = vld [vmem:[%s236 + $0x60] sm:$0xff]
        %v250 = vld [vmem:[%s236 + $0x68] sm:$0xff]
        %v251 = vld [vmem:[%s236 + $0x70] sm:$0xff]
        %v252 = vld [vmem:[%s236 + $0x78] sm:$0xff]
        %253 = vmatpush.msra.mxu0 %v252
        %254 = vmatpush.msra.mxu0 %v251
        %255 = vmatpush.msra.mxu0 %v250
        %256 = vmatpush.msra.mxu0 %v249
        %257 = vmatpush.msra.mxu0 %v248
        %258 = vmatpush.msra.mxu0 %v247
        %259 = vmatpush.msra.mxu0 %v246
        %260 = vmatpush.msra.mxu0 %v245
        %261 = vmatpush.msra.mxu0 %v244
        %262 = vmatpush.msra.mxu0 %v243
        %263 = vmatpush.msra.mxu0 %v242
        %264 = vmatpush.msra.mxu0 %v241
        %265 = vmatpush.msra.mxu0 %v240
        %266 = vmatpush.msra.mxu0 %v239
        %267 = vmatpush.msra.mxu0 %v238
        %268 = vmatpush.msra.mxu0 %v237
        %269 = vmatmul.f32.gmra.mxu0 %v202
        %v270 = vpop.f32.mrf.mxu0
        %v271 = vadd.f32 0.0, %v270
        %272 = vmatmul.f32.gmra.mxu0 %v203
        %v273 = vpop.f32.mrf.mxu0
        %v274 = vadd.f32 0.0, %v273
        %275 = vmatmul.f32.gmra.mxu0 %v204
        %v276 = vpop.f32.mrf.mxu0
        %v277 = vadd.f32 0.0, %v276
        %278 = vmatmul.f32.gmra.mxu0 %v205
        %v279 = vpop.f32.mrf.mxu0
        %v280 = vadd.f32 0.0, %v279
        %281 = vmatmul.f32.gmra.mxu0 %v206
        %v282 = vpop.f32.mrf.mxu0
        %v283 = vadd.f32 0.0, %v282
        %284 = vmatmul.f32.gmra.mxu0 %v207
        %v285 = vpop.f32.mrf.mxu0
        %v286 = vadd.f32 0.0, %v285
        %287 = vmatmul.f32.gmra.mxu0 %v208
        %v288 = vpop.f32.mrf.mxu0
        %v289 = vadd.f32 0.0, %v288
        %290 = vmatmul.f32.gmra.mxu0 %v209
        %v291 = vpop.f32.mrf.mxu0
        %v292 = vadd.f32 0.0, %v291
        %293 = vmatmul.f32.gmra.mxu0 %v210
        %v294 = vpop.f32.mrf.mxu0
        %v295 = vadd.f32 0.0, %v294
        %296 = vmatmul.f32.gmra.mxu0 %v211
        %v297 = vpop.f32.mrf.mxu0
        %v298 = vadd.f32 0.0, %v297
        %299 = vmatmul.f32.gmra.mxu0 %v212
        %v300 = vpop.f32.mrf.mxu0
        %v301 = vadd.f32 0.0, %v300
        %302 = vmatmul.f32.gmra.mxu0 %v213
        %v303 = vpop.f32.mrf.mxu0
        %v304 = vadd.f32 0.0, %v303
        %305 = vmatmul.f32.gmra.mxu0 %v214
        %v306 = vpop.f32.mrf.mxu0
        %v307 = vadd.f32 0.0, %v306
        %308 = vmatmul.f32.gmra.mxu0 %v215
        %v309 = vpop.f32.mrf.mxu0
        %v310 = vadd.f32 0.0, %v309
        %311 = vmatmul.f32.gmra.mxu0 %v216
        %v312 = vpop.f32.mrf.mxu0
        %v313 = vadd.f32 0.0, %v312
        %314 = vmatmul.f32.gmra.mxu0 %v217
        %v315 = vpop.f32.mrf.mxu0
        %v316 = vadd.f32 0.0, %v315
        %317 = vdwg.mxu0
        %318 = vmatpush.msra.mxu0 %v235
        %319 = vmatpush.msra.mxu0 %v234
        %320 = vmatpush.msra.mxu0 %v233
        %321 = vmatpush.msra.mxu0 %v232
        %322 = vmatpush.msra.mxu0 %v231
        %323 = vmatpush.msra.mxu0 %v230
        %324 = vmatpush.msra.mxu0 %v229
        %325 = vmatpush.msra.mxu0 %v228
        %326 = vmatpush.msra.mxu0 %v227
        %327 = vmatpush.msra.mxu0 %v226
        %328 = vmatpush.msra.mxu0 %v225
        %329 = vmatpush.msra.mxu0 %v224
        %330 = vmatpush.msra.mxu0 %v223
        %331 = vmatpush.msra.mxu0 %v222
        %332 = vmatpush.msra.mxu0 %v221
        %333 = vmatpush.msra.mxu0 %v220
        %334 = vmatmul.f32.gmra.mxu0 %v200
        %v335 = vpop.f32.mrf.mxu0
        %v336 = vadd.f32 %v271, %v335
        %337 = vmatmul.f32.gmra.mxu0 %v201
        %v338 = vpop.f32.mrf.mxu0
        %v339 = vadd.f32 %v274, %v338
        %340 = vmatmul.f32.gmra.mxu0 %v202
        %v341 = vpop.f32.mrf.mxu0
        %v342 = vadd.f32 %v277, %v341
        %343 = vmatmul.f32.gmra.mxu0 %v203
        %v344 = vpop.f32.mrf.mxu0
        %v345 = vadd.f32 %v280, %v344
        %346 = vmatmul.f32.gmra.mxu0 %v204
        %v347 = vpop.f32.mrf.mxu0
        %v348 = vadd.f32 %v283, %v347
        %349 = vmatmul.f32.gmra.mxu0 %v205
        %v350 = vpop.f32.mrf.mxu0
        %v351 = vadd.f32 %v286, %v350
        %352 = vmatmul.f32.gmra.mxu0 %v206
        %v353 = vpop.f32.mrf.mxu0
        %v354 = vadd.f32 %v289, %v353
        %355 = vmatmul.f32.gmra.mxu0 %v207
        %v356 = vpop.f32.mrf.mxu0
        %v357 = vadd.f32 %v292, %v356
        %358 = vmatmul.f32.gmra.mxu0 %v208
        %v359 = vpop.f32.mrf.mxu0
        %v360 = vadd.f32 %v295, %v359
        %361 = vmatmul.f32.gmra.mxu0 %v209
        %v362 = vpop.f32.mrf.mxu0
        %v363 = vadd.f32 %v298, %v362
        %364 = vmatmul.f32.gmra.mxu0 %v210
        %v365 = vpop.f32.mrf.mxu0
        %v366 = vadd.f32 %v301, %v365
        %367 = vmatmul.f32.gmra.mxu0 %v211
        %v368 = vpop.f32.mrf.mxu0
        %v369 = vadd.f32 %v304, %v368
        %370 = vmatmul.f32.gmra.mxu0 %v212
        %v371 = vpop.f32.mrf.mxu0
        %v372 = vadd.f32 %v307, %v371
        %373 = vmatmul.f32.gmra.mxu0 %v213
        %v374 = vpop.f32.mrf.mxu0
        %v375 = vadd.f32 %v310, %v374
        %376 = vmatmul.f32.gmra.mxu0 %v214
        %v377 = vpop.f32.mrf.mxu0
        %v378 = vadd.f32 %v313, %v377
        %379 = vmatmul.f32.gmra.mxu0 %v215
        %v380 = vpop.f32.mrf.mxu0
        %v381 = vadd.f32 %v316, %v380
        %382 = vdwg.mxu0
        %s383 = scalar_lea.vmem %s1, 768
        %v384 = vld [vmem:[%s383] sm:$0xff]
        %v385 = vld [vmem:[%s383 + $0x8] sm:$0xff]
        %v386 = vld [vmem:[%s383 + $0x10] sm:$0xff]
        %v387 = vld [vmem:[%s383 + $0x18] sm:$0xff]
        %v388 = vld [vmem:[%s383 + $0x20] sm:$0xff]
        %v389 = vld [vmem:[%s383 + $0x28] sm:$0xff]
        %v390 = vld [vmem:[%s383 + $0x30] sm:$0xff]
        %v391 = vld [vmem:[%s383 + $0x38] sm:$0xff]
        %v392 = vld [vmem:[%s383 + $0x40] sm:$0xff]
        %v393 = vld [vmem:[%s383 + $0x48] sm:$0xff]
        %v394 = vld [vmem:[%s383 + $0x50] sm:$0xff]
        %v395 = vld [vmem:[%s383 + $0x58] sm:$0xff]
        %v396 = vld [vmem:[%s383 + $0x60] sm:$0xff]
        %v397 = vld [vmem:[%s383 + $0x68] sm:$0xff]
        %v398 = vld [vmem:[%s383 + $0x70] sm:$0xff]
        %v399 = vld [vmem:[%s383 + $0x78] sm:$0xff]
        %400 = vmatpush.msra.mxu0 %v399
        %401 = vmatpush.msra.mxu0 %v398
        %402 = vmatpush.msra.mxu0 %v397
        %403 = vmatpush.msra.mxu0 %v396
        %404 = vmatpush.msra.mxu0 %v395
        %405 = vmatpush.msra.mxu0 %v394
        %406 = vmatpush.msra.mxu0 %v393
        %407 = vmatpush.msra.mxu0 %v392
        %408 = vmatpush.msra.mxu0 %v391
        %409 = vmatpush.msra.mxu0 %v390
        %410 = vmatpush.msra.mxu0 %v389
        %411 = vmatpush.msra.mxu0 %v388
        %412 = vmatpush.msra.mxu0 %v387
        %413 = vmatpush.msra.mxu0 %v386
        %414 = vmatpush.msra.mxu0 %v385
        %415 = vmatpush.msra.mxu0 %v384
        %416 = vmatmul.f32.gmra.mxu0 %v204
        %v417 = vpop.f32.mrf.mxu0
        %v418 = vadd.f32 0.0, %v417
        %419 = vmatmul.f32.gmra.mxu0 %v205
        %v420 = vpop.f32.mrf.mxu0
        %v421 = vadd.f32 0.0, %v420
        %422 = vmatmul.f32.gmra.mxu0 %v206
        %v423 = vpop.f32.mrf.mxu0
        %v424 = vadd.f32 0.0, %v423
        %425 = vmatmul.f32.gmra.mxu0 %v207
        %v426 = vpop.f32.mrf.mxu0
        %v427 = vadd.f32 0.0, %v426
        %428 = vmatmul.f32.gmra.mxu0 %v208
        %v429 = vpop.f32.mrf.mxu0
        %v430 = vadd.f32 0.0, %v429
        %431 = vmatmul.f32.gmra.mxu0 %v209
        %v432 = vpop.f32.mrf.mxu0
        %v433 = vadd.f32 0.0, %v432
        %434 = vmatmul.f32.gmra.mxu0 %v210
        %v435 = vpop.f32.mrf.mxu0
        %v436 = vadd.f32 0.0, %v435
        %437 = vmatmul.f32.gmra.mxu0 %v211
        %v438 = vpop.f32.mrf.mxu0
        %v439 = vadd.f32 0.0, %v438
        %440 = vmatmul.f32.gmra.mxu0 %v212
        %v441 = vpop.f32.mrf.mxu0
        %v442 = vadd.f32 0.0, %v441
        %443 = vmatmul.f32.gmra.mxu0 %v213
        %v444 = vpop.f32.mrf.mxu0
        %v445 = vadd.f32 0.0, %v444
        %446 = vmatmul.f32.gmra.mxu0 %v214
        %v447 = vpop.f32.mrf.mxu0
        %v448 = vadd.f32 0.0, %v447
        %449 = vmatmul.f32.gmra.mxu0 %v215
        %v450 = vpop.f32.mrf.mxu0
        %v451 = vadd.f32 0.0, %v450
        %452 = vmatmul.f32.gmra.mxu0 %v216
        %v453 = vpop.f32.mrf.mxu0
        %v454 = vadd.f32 0.0, %v453
        %455 = vmatmul.f32.gmra.mxu0 %v217
        %v456 = vpop.f32.mrf.mxu0
        %v457 = vadd.f32 0.0, %v456
        %458 = vmatmul.f32.gmra.mxu0 %v218
        %v459 = vpop.f32.mrf.mxu0
        %v460 = vadd.f32 0.0, %v459
        %461 = vmatmul.f32.gmra.mxu0 %v219
        %v462 = vpop.f32.mrf.mxu0
        %v463 = vadd.f32 0.0, %v462
        %464 = vdwg.mxu0
        %v465 = vadd.f32 %v336, %v418
        %v466 = vadd.f32 %v339, %v421
        %v467 = vadd.f32 %v342, %v424
        %v468 = vadd.f32 %v345, %v427
        %v469 = vadd.f32 %v348, %v430
        %v470 = vadd.f32 %v351, %v433
        %v471 = vadd.f32 %v354, %v436
        %v472 = vadd.f32 %v357, %v439
        %v473 = vadd.f32 %v360, %v442
        %v474 = vadd.f32 %v363, %v445
        %v475 = vadd.f32 %v366, %v448
        %v476 = vadd.f32 %v369, %v451
        %v477 = vadd.f32 %v372, %v454
        %v478 = vadd.f32 %v375, %v457
        %v479 = vadd.f32 %v378, %v460
        %v480 = vadd.f32 %v381, %v463
        %v481 = vld [vmem:[%s199 + $0x1] sm:$0xff]
        %v482 = vld [vmem:[%s199 + $0x9] sm:$0xff]
        %v483 = vld [vmem:[%s199 + $0x19] sm:$0xff]
        %v484 = vld [vmem:[%s199 + $0x21] sm:$0xff]
        %v485 = vld [vmem:[%s199 + $0x31] sm:$0xff]
        %v486 = vld [vmem:[%s199 + $0x39] sm:$0xff]
        %v487 = vld [vmem:[%s199 + $0x49] sm:$0xff]
        %v488 = vld [vmem:[%s199 + $0x51] sm:$0xff]
        %v489 = vld [vmem:[%s199 + $0x61] sm:$0xff]
        %v490 = vld [vmem:[%s199 + $0x69] sm:$0xff]
        %v491 = vld [vmem:[%s199 + $0x79] sm:$0xff]
        %v492 = vld [vmem:[%s199 + $0x81] sm:$0xff]
        %v493 = vld [vmem:[%s199 + $0x91] sm:$0xff]
        %v494 = vld [vmem:[%s199 + $0x99] sm:$0xff]
        %v495 = vld [vmem:[%s199 + $0xa9] sm:$0xff]
        %v496 = vld [vmem:[%s199 + $0xb1] sm:$0xff]
        %v497 = vld [vmem:[%s199 + $0xc1] sm:$0xff]
        %v498 = vld [vmem:[%s199 + $0xc9] sm:$0xff]
        %v499 = vld [vmem:[%s199 + $0xd9] sm:$0xff]
        %v500 = vld [vmem:[%s199 + $0xe1] sm:$0xff]
        %s501 = scalar_lea.vmem %s1, 128
        %v502 = vld [vmem:[%s501] sm:$0xff]
        %v503 = vld [vmem:[%s501 + $0x8] sm:$0xff]
        %v504 = vld [vmem:[%s501 + $0x10] sm:$0xff]
        %v505 = vld [vmem:[%s501 + $0x18] sm:$0xff]
        %v506 = vld [vmem:[%s501 + $0x20] sm:$0xff]
        %v507 = vld [vmem:[%s501 + $0x28] sm:$0xff]
        %v508 = vld [vmem:[%s501 + $0x30] sm:$0xff]
        %v509 = vld [vmem:[%s501 + $0x38] sm:$0xff]
        %v510 = vld [vmem:[%s501 + $0x40] sm:$0xff]
        %v511 = vld [vmem:[%s501 + $0x48] sm:$0xff]
        %v512 = vld [vmem:[%s501 + $0x50] sm:$0xff]
        %v513 = vld [vmem:[%s501 + $0x58] sm:$0xff]
        %v514 = vld [vmem:[%s501 + $0x60] sm:$0xff]
        %v515 = vld [vmem:[%s501 + $0x68] sm:$0xff]
        %v516 = vld [vmem:[%s501 + $0x70] sm:$0xff]
        %v517 = vld [vmem:[%s501 + $0x78] sm:$0xff]
        %518 = vmatpush.msra.mxu0 %v517
        %519 = vmatpush.msra.mxu0 %v516
        %520 = vmatpush.msra.mxu0 %v515
        %521 = vmatpush.msra.mxu0 %v514
        %522 = vmatpush.msra.mxu0 %v513
        %523 = vmatpush.msra.mxu0 %v512
        %524 = vmatpush.msra.mxu0 %v511
        %525 = vmatpush.msra.mxu0 %v510
        %526 = vmatpush.msra.mxu0 %v509
        %527 = vmatpush.msra.mxu0 %v508
        %528 = vmatpush.msra.mxu0 %v507
        %529 = vmatpush.msra.mxu0 %v506
        %530 = vmatpush.msra.mxu0 %v505
        %531 = vmatpush.msra.mxu0 %v504
        %532 = vmatpush.msra.mxu0 %v503
        %533 = vmatpush.msra.mxu0 %v502
        %534 = vmatmul.f32.gmra.mxu0 %v481
        %v535 = vpop.f32.mrf.mxu0
        %v536 = vadd.f32 0.0, %v535
        %537 = vmatmul.f32.gmra.mxu0 %v482
        %v538 = vpop.f32.mrf.mxu0
        %v539 = vadd.f32 0.0, %v538
        %540 = vmatmul.f32.gmra.mxu0 %v483
        %v541 = vpop.f32.mrf.mxu0
        %v542 = vadd.f32 0.0, %v541
        %543 = vmatmul.f32.gmra.mxu0 %v484
        %v544 = vpop.f32.mrf.mxu0
        %v545 = vadd.f32 0.0, %v544
        %546 = vmatmul.f32.gmra.mxu0 %v485
        %v547 = vpop.f32.mrf.mxu0
        %v548 = vadd.f32 0.0, %v547
        %549 = vmatmul.f32.gmra.mxu0 %v486
        %v550 = vpop.f32.mrf.mxu0
        %v551 = vadd.f32 0.0, %v550
        %552 = vmatmul.f32.gmra.mxu0 %v487
        %v553 = vpop.f32.mrf.mxu0
        %v554 = vadd.f32 0.0, %v553
        %555 = vmatmul.f32.gmra.mxu0 %v488
        %v556 = vpop.f32.mrf.mxu0
        %v557 = vadd.f32 0.0, %v556
        %558 = vmatmul.f32.gmra.mxu0 %v489
        %v559 = vpop.f32.mrf.mxu0
        %v560 = vadd.f32 0.0, %v559
        %561 = vmatmul.f32.gmra.mxu0 %v490
        %v562 = vpop.f32.mrf.mxu0
        %v563 = vadd.f32 0.0, %v562
        %564 = vmatmul.f32.gmra.mxu0 %v491
        %v565 = vpop.f32.mrf.mxu0
        %v566 = vadd.f32 0.0, %v565
        %567 = vmatmul.f32.gmra.mxu0 %v492
        %v568 = vpop.f32.mrf.mxu0
        %v569 = vadd.f32 0.0, %v568
        %570 = vmatmul.f32.gmra.mxu0 %v493
        %v571 = vpop.f32.mrf.mxu0
        %v572 = vadd.f32 0.0, %v571
        %573 = vmatmul.f32.gmra.mxu0 %v494
        %v574 = vpop.f32.mrf.mxu0
        %v575 = vadd.f32 0.0, %v574
        %576 = vmatmul.f32.gmra.mxu0 %v495
        %v577 = vpop.f32.mrf.mxu0
        %v578 = vadd.f32 0.0, %v577
        %579 = vmatmul.f32.gmra.mxu0 %v496
        %v580 = vpop.f32.mrf.mxu0
        %v581 = vadd.f32 0.0, %v580
        %582 = vdwg.mxu0
        %v583 = vadd.f32 %v465, %v536
        %v584 = vadd.f32 %v466, %v539
        %v585 = vadd.f32 %v467, %v542
        %v586 = vadd.f32 %v468, %v545
        %v587 = vadd.f32 %v469, %v548
        %v588 = vadd.f32 %v470, %v551
        %v589 = vadd.f32 %v471, %v554
        %v590 = vadd.f32 %v472, %v557
        %v591 = vadd.f32 %v473, %v560
        %v592 = vadd.f32 %v474, %v563
        %v593 = vadd.f32 %v475, %v566
        %v594 = vadd.f32 %v476, %v569
        %v595 = vadd.f32 %v477, %v572
        %v596 = vadd.f32 %v478, %v575
        %v597 = vadd.f32 %v479, %v578
        %v598 = vadd.f32 %v480, %v581
        %s599 = scalar_lea.vmem %s1, 512
        %v600 = vld [vmem:[%s599] sm:$0xff]
        %v601 = vld [vmem:[%s599 + $0x8] sm:$0xff]
        %v602 = vld [vmem:[%s599 + $0x10] sm:$0xff]
        %v603 = vld [vmem:[%s599 + $0x18] sm:$0xff]
        %v604 = vld [vmem:[%s599 + $0x20] sm:$0xff]
        %v605 = vld [vmem:[%s599 + $0x28] sm:$0xff]
        %v606 = vld [vmem:[%s599 + $0x30] sm:$0xff]
        %v607 = vld [vmem:[%s599 + $0x38] sm:$0xff]
        %v608 = vld [vmem:[%s599 + $0x40] sm:$0xff]
        %v609 = vld [vmem:[%s599 + $0x48] sm:$0xff]
        %v610 = vld [vmem:[%s599 + $0x50] sm:$0xff]
        %v611 = vld [vmem:[%s599 + $0x58] sm:$0xff]
        %v612 = vld [vmem:[%s599 + $0x60] sm:$0xff]
        %v613 = vld [vmem:[%s599 + $0x68] sm:$0xff]
        %v614 = vld [vmem:[%s599 + $0x70] sm:$0xff]
        %v615 = vld [vmem:[%s599 + $0x78] sm:$0xff]
        %616 = vmatpush.msra.mxu0 %v615
        %617 = vmatpush.msra.mxu0 %v614
        %618 = vmatpush.msra.mxu0 %v613
        %619 = vmatpush.msra.mxu0 %v612
        %620 = vmatpush.msra.mxu0 %v611
        %621 = vmatpush.msra.mxu0 %v610
        %622 = vmatpush.msra.mxu0 %v609
        %623 = vmatpush.msra.mxu0 %v608
        %624 = vmatpush.msra.mxu0 %v607
        %625 = vmatpush.msra.mxu0 %v606
        %626 = vmatpush.msra.mxu0 %v605
        %627 = vmatpush.msra.mxu0 %v604
        %628 = vmatpush.msra.mxu0 %v603
        %629 = vmatpush.msra.mxu0 %v602
        %630 = vmatpush.msra.mxu0 %v601
        %631 = vmatpush.msra.mxu0 %v600
        %632 = vmatmul.f32.gmra.mxu0 %v483
        %v633 = vpop.f32.mrf.mxu0
        %v634 = vadd.f32 0.0, %v633
        %635 = vmatmul.f32.gmra.mxu0 %v484
        %v636 = vpop.f32.mrf.mxu0
        %v637 = vadd.f32 0.0, %v636
        %638 = vmatmul.f32.gmra.mxu0 %v485
        %v639 = vpop.f32.mrf.mxu0
        %v640 = vadd.f32 0.0, %v639
        %641 = vmatmul.f32.gmra.mxu0 %v486
        %v642 = vpop.f32.mrf.mxu0
        %v643 = vadd.f32 0.0, %v642
        %644 = vmatmul.f32.gmra.mxu0 %v487
        %v645 = vpop.f32.mrf.mxu0
        %v646 = vadd.f32 0.0, %v645
        %647 = vmatmul.f32.gmra.mxu0 %v488
        %v648 = vpop.f32.mrf.mxu0
        %v649 = vadd.f32 0.0, %v648
        %650 = vmatmul.f32.gmra.mxu0 %v489
        %v651 = vpop.f32.mrf.mxu0
        %v652 = vadd.f32 0.0, %v651
        %653 = vmatmul.f32.gmra.mxu0 %v490
        %v654 = vpop.f32.mrf.mxu0
        %v655 = vadd.f32 0.0, %v654
        %656 = vmatmul.f32.gmra.mxu0 %v491
        %v657 = vpop.f32.mrf.mxu0
        %v658 = vadd.f32 0.0, %v657
        %659 = vmatmul.f32.gmra.mxu0 %v492
        %v660 = vpop.f32.mrf.mxu0
        %v661 = vadd.f32 0.0, %v660
        %662 = vmatmul.f32.gmra.mxu0 %v493
        %v663 = vpop.f32.mrf.mxu0
        %v664 = vadd.f32 0.0, %v663
        %665 = vmatmul.f32.gmra.mxu0 %v494
        %v666 = vpop.f32.mrf.mxu0
        %v667 = vadd.f32 0.0, %v666
        %668 = vmatmul.f32.gmra.mxu0 %v495
        %v669 = vpop.f32.mrf.mxu0
        %v670 = vadd.f32 0.0, %v669
        %671 = vmatmul.f32.gmra.mxu0 %v496
        %v672 = vpop.f32.mrf.mxu0
        %v673 = vadd.f32 0.0, %v672
        %674 = vmatmul.f32.gmra.mxu0 %v497
        %v675 = vpop.f32.mrf.mxu0
        %v676 = vadd.f32 0.0, %v675
        %677 = vmatmul.f32.gmra.mxu0 %v498
        %v678 = vpop.f32.mrf.mxu0
        %v679 = vadd.f32 0.0, %v678
        %680 = vdwg.mxu0
        %v681 = vadd.f32 %v583, %v634
        %v682 = vadd.f32 %v584, %v637
        %v683 = vadd.f32 %v585, %v640
        %v684 = vadd.f32 %v586, %v643
        %v685 = vadd.f32 %v587, %v646
        %v686 = vadd.f32 %v588, %v649
        %v687 = vadd.f32 %v589, %v652
        %v688 = vadd.f32 %v590, %v655
        %v689 = vadd.f32 %v591, %v658
        %v690 = vadd.f32 %v592, %v661
        %v691 = vadd.f32 %v593, %v664
        %v692 = vadd.f32 %v594, %v667
        %v693 = vadd.f32 %v595, %v670
        %v694 = vadd.f32 %v596, %v673
        %v695 = vadd.f32 %v597, %v676
        %v696 = vadd.f32 %v598, %v679
        %s697 = scalar_lea.vmem %s1, 896
        %v698 = vld [vmem:[%s697] sm:$0xff]
        %v699 = vld [vmem:[%s697 + $0x8] sm:$0xff]
        %v700 = vld [vmem:[%s697 + $0x10] sm:$0xff]
        %v701 = vld [vmem:[%s697 + $0x18] sm:$0xff]
        %v702 = vld [vmem:[%s697 + $0x20] sm:$0xff]
        %v703 = vld [vmem:[%s697 + $0x28] sm:$0xff]
        %v704 = vld [vmem:[%s697 + $0x30] sm:$0xff]
        %v705 = vld [vmem:[%s697 + $0x38] sm:$0xff]
        %v706 = vld [vmem:[%s697 + $0x40] sm:$0xff]
        %v707 = vld [vmem:[%s697 + $0x48] sm:$0xff]
        %v708 = vld [vmem:[%s697 + $0x50] sm:$0xff]
        %v709 = vld [vmem:[%s697 + $0x58] sm:$0xff]
        %v710 = vld [vmem:[%s697 + $0x60] sm:$0xff]
        %v711 = vld [vmem:[%s697 + $0x68] sm:$0xff]
        %v712 = vld [vmem:[%s697 + $0x70] sm:$0xff]
        %v713 = vld [vmem:[%s697 + $0x78] sm:$0xff]
        %714 = vmatpush.msra.mxu0 %v713
        %715 = vmatpush.msra.mxu0 %v712
        %716 = vmatpush.msra.mxu0 %v711
        %717 = vmatpush.msra.mxu0 %v710
        %718 = vmatpush.msra.mxu0 %v709
        %719 = vmatpush.msra.mxu0 %v708
        %720 = vmatpush.msra.mxu0 %v707
        %721 = vmatpush.msra.mxu0 %v706
        %722 = vmatpush.msra.mxu0 %v705
        %723 = vmatpush.msra.mxu0 %v704
        %724 = vmatpush.msra.mxu0 %v703
        %725 = vmatpush.msra.mxu0 %v702
        %726 = vmatpush.msra.mxu0 %v701
        %727 = vmatpush.msra.mxu0 %v700
        %728 = vmatpush.msra.mxu0 %v699
        %729 = vmatpush.msra.mxu0 %v698
        %730 = vmatmul.f32.gmra.mxu0 %v485
        %v731 = vpop.f32.mrf.mxu0
        %v732 = vadd.f32 0.0, %v731
        %733 = vmatmul.f32.gmra.mxu0 %v486
        %v734 = vpop.f32.mrf.mxu0
        %v735 = vadd.f32 0.0, %v734
        %736 = vmatmul.f32.gmra.mxu0 %v487
        %v737 = vpop.f32.mrf.mxu0
        %v738 = vadd.f32 0.0, %v737
        %739 = vmatmul.f32.gmra.mxu0 %v488
        %v740 = vpop.f32.mrf.mxu0
        %v741 = vadd.f32 0.0, %v740
        %742 = vmatmul.f32.gmra.mxu0 %v489
        %v743 = vpop.f32.mrf.mxu0
        %v744 = vadd.f32 0.0, %v743
        %745 = vmatmul.f32.gmra.mxu0 %v490
        %v746 = vpop.f32.mrf.mxu0
        %v747 = vadd.f32 0.0, %v746
        %748 = vmatmul.f32.gmra.mxu0 %v491
        %v749 = vpop.f32.mrf.mxu0
        %v750 = vadd.f32 0.0, %v749
        %751 = vmatmul.f32.gmra.mxu0 %v492
        %v752 = vpop.f32.mrf.mxu0
        %v753 = vadd.f32 0.0, %v752
        %754 = vmatmul.f32.gmra.mxu0 %v493
        %v755 = vpop.f32.mrf.mxu0
        %v756 = vadd.f32 0.0, %v755
        %757 = vmatmul.f32.gmra.mxu0 %v494
        %v758 = vpop.f32.mrf.mxu0
        %v759 = vadd.f32 0.0, %v758
        %760 = vmatmul.f32.gmra.mxu0 %v495
        %v761 = vpop.f32.mrf.mxu0
        %v762 = vadd.f32 0.0, %v761
        %763 = vmatmul.f32.gmra.mxu0 %v496
        %v764 = vpop.f32.mrf.mxu0
        %v765 = vadd.f32 0.0, %v764
        %766 = vmatmul.f32.gmra.mxu0 %v497
        %v767 = vpop.f32.mrf.mxu0
        %v768 = vadd.f32 0.0, %v767
        %769 = vmatmul.f32.gmra.mxu0 %v498
        %v770 = vpop.f32.mrf.mxu0
        %v771 = vadd.f32 0.0, %v770
        %772 = vmatmul.f32.gmra.mxu0 %v499
        %v773 = vpop.f32.mrf.mxu0
        %v774 = vadd.f32 0.0, %v773
        %775 = vmatmul.f32.gmra.mxu0 %v500
        %v776 = vpop.f32.mrf.mxu0
        %v777 = vadd.f32 0.0, %v776
        %778 = vdwg.mxu0
        %v779 = vadd.f32 %v681, %v732
        %v780 = vadd.f32 %v682, %v735
        %v781 = vadd.f32 %v683, %v738
        %v782 = vadd.f32 %v684, %v741
        %v783 = vadd.f32 %v685, %v744
        %v784 = vadd.f32 %v686, %v747
        %v785 = vadd.f32 %v687, %v750
        %v786 = vadd.f32 %v688, %v753
        %v787 = vadd.f32 %v689, %v756
        %v788 = vadd.f32 %v690, %v759
        %v789 = vadd.f32 %v691, %v762
        %v790 = vadd.f32 %v692, %v765
        %v791 = vadd.f32 %v693, %v768
        %v792 = vadd.f32 %v694, %v771
        %v793 = vadd.f32 %v695, %v774
        %v794 = vadd.f32 %v696, %v777
        %v795 = vld [vmem:[%s199 + $0x2] sm:$0xff]
        %v796 = vld [vmem:[%s199 + $0xa] sm:$0xff]
        %v797 = vld [vmem:[%s199 + $0x1a] sm:$0xff]
        %v798 = vld [vmem:[%s199 + $0x22] sm:$0xff]
        %v799 = vld [vmem:[%s199 + $0x32] sm:$0xff]
        %v800 = vld [vmem:[%s199 + $0x3a] sm:$0xff]
        %v801 = vld [vmem:[%s199 + $0x4a] sm:$0xff]
        %v802 = vld [vmem:[%s199 + $0x52] sm:$0xff]
        %v803 = vld [vmem:[%s199 + $0x62] sm:$0xff]
        %v804 = vld [vmem:[%s199 + $0x6a] sm:$0xff]
        %v805 = vld [vmem:[%s199 + $0x7a] sm:$0xff]
        %v806 = vld [vmem:[%s199 + $0x82] sm:$0xff]
        %v807 = vld [vmem:[%s199 + $0x92] sm:$0xff]
        %v808 = vld [vmem:[%s199 + $0x9a] sm:$0xff]
        %v809 = vld [vmem:[%s199 + $0xaa] sm:$0xff]
        %v810 = vld [vmem:[%s199 + $0xb2] sm:$0xff]
        %v811 = vld [vmem:[%s199 + $0xc2] sm:$0xff]
        %v812 = vld [vmem:[%s199 + $0xca] sm:$0xff]
        %v813 = vld [vmem:[%s199 + $0xda] sm:$0xff]
        %v814 = vld [vmem:[%s199 + $0xe2] sm:$0xff]
        %s815 = scalar_lea.vmem %s1, 256
        %v816 = vld [vmem:[%s815] sm:$0xff]
        %v817 = vld [vmem:[%s815 + $0x8] sm:$0xff]
        %v818 = vld [vmem:[%s815 + $0x10] sm:$0xff]
        %v819 = vld [vmem:[%s815 + $0x18] sm:$0xff]
        %v820 = vld [vmem:[%s815 + $0x20] sm:$0xff]
        %v821 = vld [vmem:[%s815 + $0x28] sm:$0xff]
        %v822 = vld [vmem:[%s815 + $0x30] sm:$0xff]
        %v823 = vld [vmem:[%s815 + $0x38] sm:$0xff]
        %v824 = vld [vmem:[%s815 + $0x40] sm:$0xff]
        %v825 = vld [vmem:[%s815 + $0x48] sm:$0xff]
        %v826 = vld [vmem:[%s815 + $0x50] sm:$0xff]
        %v827 = vld [vmem:[%s815 + $0x58] sm:$0xff]
        %v828 = vld [vmem:[%s815 + $0x60] sm:$0xff]
        %v829 = vld [vmem:[%s815 + $0x68] sm:$0xff]
        %v830 = vld [vmem:[%s815 + $0x70] sm:$0xff]
        %v831 = vld [vmem:[%s815 + $0x78] sm:$0xff]
        %832 = vmatpush.msra.mxu0 %v831
        %833 = vmatpush.msra.mxu0 %v830
        %834 = vmatpush.msra.mxu0 %v829
        %835 = vmatpush.msra.mxu0 %v828
        %836 = vmatpush.msra.mxu0 %v827
        %837 = vmatpush.msra.mxu0 %v826
        %838 = vmatpush.msra.mxu0 %v825
        %839 = vmatpush.msra.mxu0 %v824
        %840 = vmatpush.msra.mxu0 %v823
        %841 = vmatpush.msra.mxu0 %v822
        %842 = vmatpush.msra.mxu0 %v821
        %843 = vmatpush.msra.mxu0 %v820
        %844 = vmatpush.msra.mxu0 %v819
        %845 = vmatpush.msra.mxu0 %v818
        %846 = vmatpush.msra.mxu0 %v817
        %847 = vmatpush.msra.mxu0 %v816
        %848 = vmatmul.f32.gmra.mxu0 %v795
        %v849 = vpop.f32.mrf.mxu0
        %v850 = vadd.f32 0.0, %v849
        %851 = vmatmul.f32.gmra.mxu0 %v796
        %v852 = vpop.f32.mrf.mxu0
        %v853 = vadd.f32 0.0, %v852
        %854 = vmatmul.f32.gmra.mxu0 %v797
        %v855 = vpop.f32.mrf.mxu0
        %v856 = vadd.f32 0.0, %v855
        %857 = vmatmul.f32.gmra.mxu0 %v798
        %v858 = vpop.f32.mrf.mxu0
        %v859 = vadd.f32 0.0, %v858
        %860 = vmatmul.f32.gmra.mxu0 %v799
        %v861 = vpop.f32.mrf.mxu0
        %v862 = vadd.f32 0.0, %v861
        %863 = vmatmul.f32.gmra.mxu0 %v800
        %v864 = vpop.f32.mrf.mxu0
        %v865 = vadd.f32 0.0, %v864
        %866 = vmatmul.f32.gmra.mxu0 %v801
        %v867 = vpop.f32.mrf.mxu0
        %v868 = vadd.f32 0.0, %v867
        %869 = vmatmul.f32.gmra.mxu0 %v802
        %v870 = vpop.f32.mrf.mxu0
        %v871 = vadd.f32 0.0, %v870
        %872 = vmatmul.f32.gmra.mxu0 %v803
        %v873 = vpop.f32.mrf.mxu0
        %v874 = vadd.f32 0.0, %v873
        %875 = vmatmul.f32.gmra.mxu0 %v804
        %v876 = vpop.f32.mrf.mxu0
        %v877 = vadd.f32 0.0, %v876
        %878 = vmatmul.f32.gmra.mxu0 %v805
        %v879 = vpop.f32.mrf.mxu0
        %v880 = vadd.f32 0.0, %v879
        %881 = vmatmul.f32.gmra.mxu0 %v806
        %v882 = vpop.f32.mrf.mxu0
        %v883 = vadd.f32 0.0, %v882
        %884 = vmatmul.f32.gmra.mxu0 %v807
        %v885 = vpop.f32.mrf.mxu0
        %v886 = vadd.f32 0.0, %v885
        %887 = vmatmul.f32.gmra.mxu0 %v808
        %v888 = vpop.f32.mrf.mxu0
        %v889 = vadd.f32 0.0, %v888
        %890 = vmatmul.f32.gmra.mxu0 %v809
        %v891 = vpop.f32.mrf.mxu0
        %v892 = vadd.f32 0.0, %v891
        %893 = vmatmul.f32.gmra.mxu0 %v810
        %v894 = vpop.f32.mrf.mxu0
        %v895 = vadd.f32 0.0, %v894
        %896 = vdwg.mxu0
        %v897 = vadd.f32 %v779, %v850
        %v898 = vadd.f32 %v780, %v853
        %v899 = vadd.f32 %v781, %v856
        %v900 = vadd.f32 %v782, %v859
        %v901 = vadd.f32 %v783, %v862
        %v902 = vadd.f32 %v784, %v865
        %v903 = vadd.f32 %v785, %v868
        %v904 = vadd.f32 %v786, %v871
        %v905 = vadd.f32 %v787, %v874
        %v906 = vadd.f32 %v788, %v877
        %v907 = vadd.f32 %v789, %v880
        %v908 = vadd.f32 %v790, %v883
        %v909 = vadd.f32 %v791, %v886
        %v910 = vadd.f32 %v792, %v889
        %v911 = vadd.f32 %v793, %v892
        %v912 = vadd.f32 %v794, %v895
        %s913 = scalar_lea.vmem %s1, 640
        %v914 = vld [vmem:[%s913] sm:$0xff]
        %v915 = vld [vmem:[%s913 + $0x8] sm:$0xff]
        %v916 = vld [vmem:[%s913 + $0x10] sm:$0xff]
        %v917 = vld [vmem:[%s913 + $0x18] sm:$0xff]
        %v918 = vld [vmem:[%s913 + $0x20] sm:$0xff]
        %v919 = vld [vmem:[%s913 + $0x28] sm:$0xff]
        %v920 = vld [vmem:[%s913 + $0x30] sm:$0xff]
        %v921 = vld [vmem:[%s913 + $0x38] sm:$0xff]
        %v922 = vld [vmem:[%s913 + $0x40] sm:$0xff]
        %v923 = vld [vmem:[%s913 + $0x48] sm:$0xff]
        %v924 = vld [vmem:[%s913 + $0x50] sm:$0xff]
        %v925 = vld [vmem:[%s913 + $0x58] sm:$0xff]
        %v926 = vld [vmem:[%s913 + $0x60] sm:$0xff]
        %v927 = vld [vmem:[%s913 + $0x68] sm:$0xff]
        %v928 = vld [vmem:[%s913 + $0x70] sm:$0xff]
        %v929 = vld [vmem:[%s913 + $0x78] sm:$0xff]
        %930 = vmatpush.msra.mxu0 %v929
        %931 = vmatpush.msra.mxu0 %v928
        %932 = vmatpush.msra.mxu0 %v927
        %933 = vmatpush.msra.mxu0 %v926
        %934 = vmatpush.msra.mxu0 %v925
        %935 = vmatpush.msra.mxu0 %v924
        %936 = vmatpush.msra.mxu0 %v923
        %937 = vmatpush.msra.mxu0 %v922
        %938 = vmatpush.msra.mxu0 %v921
        %939 = vmatpush.msra.mxu0 %v920
        %940 = vmatpush.msra.mxu0 %v919
        %941 = vmatpush.msra.mxu0 %v918
        %942 = vmatpush.msra.mxu0 %v917
        %943 = vmatpush.msra.mxu0 %v916
        %944 = vmatpush.msra.mxu0 %v915
        %945 = vmatpush.msra.mxu0 %v914
        %946 = vmatmul.f32.gmra.mxu0 %v797
        %v947 = vpop.f32.mrf.mxu0
        %v948 = vadd.f32 0.0, %v947
        %949 = vmatmul.f32.gmra.mxu0 %v798
        %v950 = vpop.f32.mrf.mxu0
        %v951 = vadd.f32 0.0, %v950
        %952 = vmatmul.f32.gmra.mxu0 %v799
        %v953 = vpop.f32.mrf.mxu0
        %v954 = vadd.f32 0.0, %v953
        %955 = vmatmul.f32.gmra.mxu0 %v800
        %v956 = vpop.f32.mrf.mxu0
        %v957 = vadd.f32 0.0, %v956
        %958 = vmatmul.f32.gmra.mxu0 %v801
        %v959 = vpop.f32.mrf.mxu0
        %v960 = vadd.f32 0.0, %v959
        %961 = vmatmul.f32.gmra.mxu0 %v802
        %v962 = vpop.f32.mrf.mxu0
        %v963 = vadd.f32 0.0, %v962
        %964 = vmatmul.f32.gmra.mxu0 %v803
        %v965 = vpop.f32.mrf.mxu0
        %v966 = vadd.f32 0.0, %v965
        %967 = vmatmul.f32.gmra.mxu0 %v804
        %v968 = vpop.f32.mrf.mxu0
        %v969 = vadd.f32 0.0, %v968
        %970 = vmatmul.f32.gmra.mxu0 %v805
        %v971 = vpop.f32.mrf.mxu0
        %v972 = vadd.f32 0.0, %v971
        %973 = vmatmul.f32.gmra.mxu0 %v806
        %v974 = vpop.f32.mrf.mxu0
        %v975 = vadd.f32 0.0, %v974
        %976 = vmatmul.f32.gmra.mxu0 %v807
        %v977 = vpop.f32.mrf.mxu0
        %v978 = vadd.f32 0.0, %v977
        %979 = vmatmul.f32.gmra.mxu0 %v808
        %v980 = vpop.f32.mrf.mxu0
        %v981 = vadd.f32 0.0, %v980
        %982 = vmatmul.f32.gmra.mxu0 %v809
        %v983 = vpop.f32.mrf.mxu0
        %v984 = vadd.f32 0.0, %v983
        %985 = vmatmul.f32.gmra.mxu0 %v810
        %v986 = vpop.f32.mrf.mxu0
        %v987 = vadd.f32 0.0, %v986
        %988 = vmatmul.f32.gmra.mxu0 %v811
        %v989 = vpop.f32.mrf.mxu0
        %v990 = vadd.f32 0.0, %v989
        %991 = vmatmul.f32.gmra.mxu0 %v812
        %v992 = vpop.f32.mrf.mxu0
        %v993 = vadd.f32 0.0, %v992
        %994 = vdwg.mxu0
        %v995 = vadd.f32 %v897, %v948
        %v996 = vadd.f32 %v898, %v951
        %v997 = vadd.f32 %v899, %v954
        %v998 = vadd.f32 %v900, %v957
        %v999 = vadd.f32 %v901, %v960
        %v1000 = vadd.f32 %v902, %v963
        %v1001 = vadd.f32 %v903, %v966
        %v1002 = vadd.f32 %v904, %v969
        %v1003 = vadd.f32 %v905, %v972
        %v1004 = vadd.f32 %v906, %v975
        %v1005 = vadd.f32 %v907, %v978
        %v1006 = vadd.f32 %v908, %v981
        %v1007 = vadd.f32 %v909, %v984
        %v1008 = vadd.f32 %v910, %v987
        %v1009 = vadd.f32 %v911, %v990
        %v1010 = vadd.f32 %v912, %v993
        %s1011 = scalar_lea.vmem %s1, 1024
        %v1012 = vld [vmem:[%s1011] sm:$0xff]
        %v1013 = vld [vmem:[%s1011 + $0x8] sm:$0xff]
        %v1014 = vld [vmem:[%s1011 + $0x10] sm:$0xff]
        %v1015 = vld [vmem:[%s1011 + $0x18] sm:$0xff]
        %v1016 = vld [vmem:[%s1011 + $0x20] sm:$0xff]
        %v1017 = vld [vmem:[%s1011 + $0x28] sm:$0xff]
        %v1018 = vld [vmem:[%s1011 + $0x30] sm:$0xff]
        %v1019 = vld [vmem:[%s1011 + $0x38] sm:$0xff]
        %v1020 = vld [vmem:[%s1011 + $0x40] sm:$0xff]
        %v1021 = vld [vmem:[%s1011 + $0x48] sm:$0xff]
        %v1022 = vld [vmem:[%s1011 + $0x50] sm:$0xff]
        %v1023 = vld [vmem:[%s1011 + $0x58] sm:$0xff]
        %v1024 = vld [vmem:[%s1011 + $0x60] sm:$0xff]
        %v1025 = vld [vmem:[%s1011 + $0x68] sm:$0xff]
        %v1026 = vld [vmem:[%s1011 + $0x70] sm:$0xff]
        %v1027 = vld [vmem:[%s1011 + $0x78] sm:$0xff]
        %1028 = vmatpush.msra.mxu0 %v1027
        %1029 = vmatpush.msra.mxu0 %v1026
        %1030 = vmatpush.msra.mxu0 %v1025
        %1031 = vmatpush.msra.mxu0 %v1024
        %1032 = vmatpush.msra.mxu0 %v1023
        %1033 = vmatpush.msra.mxu0 %v1022
        %1034 = vmatpush.msra.mxu0 %v1021
        %1035 = vmatpush.msra.mxu0 %v1020
        %1036 = vmatpush.msra.mxu0 %v1019
        %1037 = vmatpush.msra.mxu0 %v1018
        %1038 = vmatpush.msra.mxu0 %v1017
        %1039 = vmatpush.msra.mxu0 %v1016
        %1040 = vmatpush.msra.mxu0 %v1015
        %1041 = vmatpush.msra.mxu0 %v1014
        %1042 = vmatpush.msra.mxu0 %v1013
        %1043 = vmatpush.msra.mxu0 %v1012
        %1044 = vmatmul.f32.gmra.mxu0 %v799
        %v1045 = vpop.f32.mrf.mxu0
        %v1046 = vadd.f32 0.0, %v1045
        %1047 = vmatmul.f32.gmra.mxu0 %v800
        %v1048 = vpop.f32.mrf.mxu0
        %v1049 = vadd.f32 0.0, %v1048
        %1050 = vmatmul.f32.gmra.mxu0 %v801
        %v1051 = vpop.f32.mrf.mxu0
        %v1052 = vadd.f32 0.0, %v1051
        %1053 = vmatmul.f32.gmra.mxu0 %v802
        %v1054 = vpop.f32.mrf.mxu0
        %v1055 = vadd.f32 0.0, %v1054
        %1056 = vmatmul.f32.gmra.mxu0 %v803
        %v1057 = vpop.f32.mrf.mxu0
        %v1058 = vadd.f32 0.0, %v1057
        %1059 = vmatmul.f32.gmra.mxu0 %v804
        %v1060 = vpop.f32.mrf.mxu0
        %v1061 = vadd.f32 0.0, %v1060
        %1062 = vmatmul.f32.gmra.mxu0 %v805
        %v1063 = vpop.f32.mrf.mxu0
        %v1064 = vadd.f32 0.0, %v1063
        %1065 = vmatmul.f32.gmra.mxu0 %v806
        %v1066 = vpop.f32.mrf.mxu0
        %v1067 = vadd.f32 0.0, %v1066
        %1068 = vmatmul.f32.gmra.mxu0 %v807
        %v1069 = vpop.f32.mrf.mxu0
        %v1070 = vadd.f32 0.0, %v1069
        %1071 = vmatmul.f32.gmra.mxu0 %v808
        %v1072 = vpop.f32.mrf.mxu0
        %v1073 = vadd.f32 0.0, %v1072
        %1074 = vmatmul.f32.gmra.mxu0 %v809
        %v1075 = vpop.f32.mrf.mxu0
        %v1076 = vadd.f32 0.0, %v1075
        %1077 = vmatmul.f32.gmra.mxu0 %v810
        %v1078 = vpop.f32.mrf.mxu0
        %v1079 = vadd.f32 0.0, %v1078
        %1080 = vmatmul.f32.gmra.mxu0 %v811
        %v1081 = vpop.f32.mrf.mxu0
        %v1082 = vadd.f32 0.0, %v1081
        %1083 = vmatmul.f32.gmra.mxu0 %v812
        %v1084 = vpop.f32.mrf.mxu0
        %v1085 = vadd.f32 0.0, %v1084
        %1086 = vmatmul.f32.gmra.mxu0 %v813
        %v1087 = vpop.f32.mrf.mxu0
        %v1088 = vadd.f32 0.0, %v1087
        %1089 = vmatmul.f32.gmra.mxu0 %v814
        %v1090 = vpop.f32.mrf.mxu0
        %v1091 = vadd.f32 0.0, %v1090
        %1092 = vdwg.mxu0
        %v1093 = vadd.f32 %v995, %v1046
        %v1094 = vadd.f32 %v996, %v1049
        %v1095 = vadd.f32 %v997, %v1052
        %v1096 = vadd.f32 %v998, %v1055
        %v1097 = vadd.f32 %v999, %v1058
        %v1098 = vadd.f32 %v1000, %v1061
        %v1099 = vadd.f32 %v1001, %v1064
        %v1100 = vadd.f32 %v1002, %v1067
        %v1101 = vadd.f32 %v1003, %v1070
        %v1102 = vadd.f32 %v1004, %v1073
        %v1103 = vadd.f32 %v1005, %v1076
        %v1104 = vadd.f32 %v1006, %v1079
        %v1105 = vadd.f32 %v1007, %v1082
        %v1106 = vadd.f32 %v1008, %v1085
        %v1107 = vadd.f32 %v1009, %v1088
        %v1108 = vadd.f32 %v1010, %v1091
        %1109 = vst [vmem:[%s183] sm:$0xff] %v1093
        %1110 = vst [vmem:[%s183 + $0x8] sm:$0xff] %v1094
        %1111 = vst [vmem:[%s183 + $0x10] sm:$0xff] %v1095
        %1112 = vst [vmem:[%s183 + $0x18] sm:$0xff] %v1096
        %1113 = vst [vmem:[%s183 + $0x20] sm:$0xff] %v1097
        %1114 = vst [vmem:[%s183 + $0x28] sm:$0xff] %v1098
        %1115 = vst [vmem:[%s183 + $0x30] sm:$0xff] %v1099
        %1116 = vst [vmem:[%s183 + $0x38] sm:$0xff] %v1100
        %1117 = vst [vmem:[%s183 + $0x40] sm:$0xff] %v1101
        %1118 = vst [vmem:[%s183 + $0x48] sm:$0xff] %v1102
        %1119 = vst [vmem:[%s183 + $0x50] sm:$0xff] %v1103
        %1120 = vst [vmem:[%s183 + $0x58] sm:$0xff] %v1104
        %1121 = vst [vmem:[%s183 + $0x60] sm:$0xff] %v1105
        %1122 = vst [vmem:[%s183 + $0x68] sm:$0xff] %v1106
        %1123 = vst [vmem:[%s183 + $0x70] sm:$0xff] %v1107
        %1124 = vst [vmem:[%s183 + $0x78] sm:$0xff] %v1108
        %v1125 = vadd.f32 %v1093, %v1094
        %v1126 = vadd.f32 %v1125, %v1095
        %v1127 = vadd.f32 %v1126, %v1096
        %v1128 = vadd.f32 %v1127, %v1097
        %v1129 = vadd.f32 %v1128, %v1098
        %v1130 = vadd.f32 %v1129, %v1099
        %v1131 = vadd.f32 %v1130, %v1100
        %v1132 = vadd.f32 %v1131, %v1101
        %v1133 = vadd.f32 %v1132, %v1102
        %v1134 = vadd.f32 %v1133, %v1103
        %v1135 = vadd.f32 %v1134, %v1104
        %v1136 = vadd.f32 %v1135, %v1105
        %v1137 = vadd.f32 %v1136, %v1106
        %v1138 = vadd.f32 %v1137, %v1107
        %v1139 = vadd.f32 %v1138, %v1108
        %v1140 = vrot.slane %v1139, 4
        %v1141 = vadd.f32 %v1139, %v1140
        %v1142 = vrot.slane %v1141, 2
        %v1143 = vadd.f32 %v1141, %v1142
        %v1144 = vrot.slane %v1143, 1
        %v1145 = vadd.f32 %v1143, %v1144
        %v1146 = vmul.f32 %v1093, %v1093
        %v1147 = vmul.f32 %v1094, %v1094
        %v1148 = vmul.f32 %v1095, %v1095
        %v1149 = vmul.f32 %v1096, %v1096
        %v1150 = vmul.f32 %v1097, %v1097
        %v1151 = vmul.f32 %v1098, %v1098
        %v1152 = vmul.f32 %v1099, %v1099
        %v1153 = vmul.f32 %v1100, %v1100
        %v1154 = vmul.f32 %v1101, %v1101
        %v1155 = vmul.f32 %v1102, %v1102
        %v1156 = vmul.f32 %v1103, %v1103
        %v1157 = vmul.f32 %v1104, %v1104
        %v1158 = vmul.f32 %v1105, %v1105
        %v1159 = vmul.f32 %v1106, %v1106
        %v1160 = vmul.f32 %v1107, %v1107
        %v1161 = vmul.f32 %v1108, %v1108
        %v1162 = vadd.f32 %v1146, %v1147
        %v1163 = vadd.f32 %v1162, %v1148
        %v1164 = vadd.f32 %v1163, %v1149
        %v1165 = vadd.f32 %v1164, %v1150
        %v1166 = vadd.f32 %v1165, %v1151
        %v1167 = vadd.f32 %v1166, %v1152
        %v1168 = vadd.f32 %v1167, %v1153
        %v1169 = vadd.f32 %v1168, %v1154
        %v1170 = vadd.f32 %v1169, %v1155
        %v1171 = vadd.f32 %v1170, %v1156
        %v1172 = vadd.f32 %v1171, %v1157
        %v1173 = vadd.f32 %v1172, %v1158
        %v1174 = vadd.f32 %v1173, %v1159
        %v1175 = vadd.f32 %v1174, %v1160
        %v1176 = vadd.f32 %v1175, %v1161
        %v1177 = vrot.slane %v1176, 4
        %v1178 = vadd.f32 %v1176, %v1177
        %v1179 = vrot.slane %v1178, 2
        %v1180 = vadd.f32 %v1178, %v1179
        %v1181 = vrot.slane %v1180, 1
        %v1182 = vadd.f32 %v1180, %v1181
        %vm1183 = vcmask 1040384
        %v1184 = vsel %vm1183, %v1145, %v1182
        %1185 = vst [vmem:[%s190] sm:$0x3] %v1184
        %s1186 = sand.u32 %s90, 1
        %s1187 = scalar_lea.sflag [#allocation3], %s1186
        %s1188 = sand.u32 %s90, 1
        %s1189 = smul.addr %s1188, 128
        %s1190 = scalar_lea.vmem [#allocation2], %s1189
        %s1191 = sand.u32 %s118, 1
        %s1192 = scalar_lea.sflag [#allocation5], %s1191
        %s1193 = sand.u32 %s118, 1
        %s1194 = smul.addr %s1193, 2
        %s1195 = scalar_lea.vmem [#allocation4], %s1194
        // Predicated region
        $region29: #{tpu_custom_call.1} parent=27 // pred_check
          %p1196 = pneg %p100
        $region30: #{tpu_custom_call.1} parent=27 // pred_check_branch
          %1198 = sbr.rel (%p1196) target = $region32
        $region31: #{tpu_custom_call.1} parent=27 // pred_region
          %s1199 = smul.u32 16, %s26
          %1201 = vsyncadd %s1187, 0
          %s1202 = smul.addr %s25, 32
          %s1203 = sadd.s32 %s1199, %s1202
          %s1204 = smul.addr %s1203, 8
          %s1205 = scalar_lea.hbm %s2, %s1204
          %s1206 = sshll.u32 %s1190, 4
          %s1207 = int_to_ptr.vmem [resolvable:$true] %s1206
          %s1208 = sshll.u32 %s1205, 4
          %s1209 = int_to_ptr.hbm [resolvable:$true] %s1208
          %1214 = dma.vmem_to_hbm [thread:$0]  %s1207, 2048, %s1209, %s1187, 128, 128, 8
        $region32: #{tpu_custom_call.1} parent=27 // pred_fallthru
          _
        // Predicated region
        $region33: #{tpu_custom_call.1} parent=27 // pred_check
          %p1215 = pneg %p128
        $region34: #{tpu_custom_call.1} parent=27 // pred_check_branch
          %1217 = sbr.rel (%p1215) target = $region36
        $region35: #{tpu_custom_call.1} parent=27 // pred_region
          %1219 = vsyncadd %s1192, 0
          %s1220 = smul.addr %s25, 2
          %s1221 = sadd.s32 %s26, %s1220
          %s1222 = smul.addr %s1221, 2
          %s1223 = scalar_lea.hbm %s3, %s1222
          %s1225 = sshll.u32 %s1195, 4
          %s1226 = int_to_ptr.vmem [resolvable:$true] %s1225
          %s1227 = sshll.u32 %s1223, 4
          %s1228 = int_to_ptr.hbm [resolvable:$true] %s1227
          %1230 = dma.vmem_to_hbm [thread:$0]  %s1226, 32, %s1228, %s1192
        $region36: #{tpu_custom_call.1} parent=27 // pred_fallthru
          _
      $region28: #{tpu_custom_call.1} parent=5 // pred_fallthru
        _
      %p1231 = scmp.le.s32.totalorder 2, %s16
      // Predicated region
      $region37: #{tpu_custom_call.1} parent=5 // pred_check
        %p1232 = pneg %p1231
      $region38: #{tpu_custom_call.1} parent=5 // pred_check_branch
        %1234 = sbr.rel (%p1232) target = $region40
      $region39: #{tpu_custom_call.1} parent=5 // pred_region
        %s1235 = ssub.s32 %s16, 2
        // Predicated region
        $region41: #{tpu_custom_call.1} parent=39 // pred_check
          %p1236 = pneg %p106
        $region42: #{tpu_custom_call.1} parent=39 // pred_check_branch
          %1238 = sbr.rel (%p1236) target = $region44
        $region43: #{tpu_custom_call.1} parent=39 // pred_region
          %s1239 = sand.u32 %s91, 1
          %s1240 = scalar_lea.sflag [#allocation3], %s1239
          %s1241 = sand.u32 %s91, 1
          %s1242 = smul.addr %s1241, 128
          %s1243 = scalar_lea.vmem [#allocation2], %s1242
          %1245 = dma.done %s1240, 2048
        $region44: #{tpu_custom_call.1} parent=39 // pred_fallthru
          _
        // Predicated region
        $region45: #{tpu_custom_call.1} parent=39 // pred_check
          %p1246 = pneg %p134
        $region46: #{tpu_custom_call.1} parent=39 // pred_check_branch
          %1248 = sbr.rel (%p1246) target = $region48
        $region47: #{tpu_custom_call.1} parent=39 // pred_region
          %s1249 = sand.u32 %s119, 1
          %s1250 = scalar_lea.sflag [#allocation5], %s1249
          %s1251 = sand.u32 %s119, 1
          %s1252 = smul.addr %s1251, 2
          %s1253 = scalar_lea.vmem [#allocation4], %s1252
          %1255 = dma.done %s1250, 32
        $region48: #{tpu_custom_call.1} parent=39 // pred_fallthru
          _
      $region40: #{tpu_custom_call.1} parent=5 // pred_fallthru
        _
    $region6: #{tpu_custom_call.1} parent=1 // loop_footer
      %s20 = sadd.s32 1, %s16
    $region7: #{tpu_custom_call.1} parent=1 // loop_footer_branch
      %15 = sbr.rel target = $region3
    $region8: #{tpu_custom_call.1} parent=1 // loop_exit
      _
    %1256 = vsyncpa [#allocation3], 1
    %s1257 = scalar_lea.sflag [#allocation3], 1
    %1258 = vsyncpa %s1257, 1
    %1259 = vsyncpa [#allocation5], 1
    %s1260 = scalar_lea.sflag [#allocation5], 1
    %1261 = vsyncpa %s1260, 1

</llo_original>
